<compile_context>
chip_gen: v5e
topology: v5e:2x2
jax: 0.10.0
libtpu: 0.0.40
codegen_flags: <defaults>
</compile_context>

<pallas_src>
import math

import jax
import jax.numpy as jnp
from jax import lax
from jax.experimental import pallas as pl
from jax.experimental.pallas import tpu as pltpu


_VMEM_LIMIT = 48 * 1024 * 1024


def _round_up(x, m):
    return ((x + m - 1) // m) * m


def _cparams(*sem):
    return pltpu.CompilerParams(dimension_semantics=tuple(sem),
                                vmem_limit_bytes=_VMEM_LIMIT)


# ----------------------------------------------------------------------------- #
# Tiled matmul (bf16 operands on the MXU, f32 accumulation)
# ----------------------------------------------------------------------------- #
def _matmul_kernel(a_ref, b_ref, o_ref, acc_ref):
    @pl.when(pl.program_id(2) == 0)
    def _():
        acc_ref[...] = jnp.zeros_like(acc_ref)

    acc_ref[...] += jnp.dot(a_ref[...], b_ref[...],
                            preferred_element_type=jnp.float32)

    @pl.when(pl.program_id(2) == pl.num_programs(2) - 1)
    def _():
        o_ref[...] = acc_ref[...].astype(o_ref.dtype)


def pallas_matmul(a, b):
    M, K = a.shape
    K2, N = b.shape
    assert K == K2
    tm = min(256, _round_up(M, 16))
    tn = min(256, _round_up(N, 128))
    tk = min(512, _round_up(K, 128))
    Mp, Kp, Np = _round_up(M, tm), _round_up(K, tk), _round_up(N, tn)
    a_p = jnp.pad(a.astype(jnp.bfloat16), ((0, Mp - M), (0, Kp - K)))
    b_p = jnp.pad(b.astype(jnp.bfloat16), ((0, Kp - K), (0, Np - N)))
    out = pl.pallas_call(
        _matmul_kernel,
        out_shape=jax.ShapeDtypeStruct((Mp, Np), jnp.float32),
        grid=(Mp // tm, Np // tn, Kp // tk),
        in_specs=[pl.BlockSpec((tm, tk), lambda i, j, k: (i, k)),
                  pl.BlockSpec((tk, tn), lambda i, j, k: (k, j))],
        out_specs=pl.BlockSpec((tm, tn), lambda i, j, k: (i, j)),
        scratch_shapes=[pltpu.VMEM((tm, tn), jnp.float32)],
        compiler_params=_cparams("parallel", "parallel", "arbitrary"),
    )(a_p, b_p)
    return out[:M, :N]


# ----------------------------------------------------------------------------- #
# Batched matmul: (G, M, K) @ (G, K, N) -> (G, M, N).  K and N stay whole (small),
# M is tiled; used for the fused x_proj/dt_proj over the K=4 scan directions.
# ----------------------------------------------------------------------------- #
def _bmm_kernel(a_ref, b_ref, o_ref):
    o_ref[0] = jnp.dot(a_ref[0], b_ref[0], preferred_element_type=jnp.float32)


def pallas_bmm(a, b):
    G, M, K = a.shape
    _, _, N = b.shape
    tm = min(256, _round_up(M, 16))
    Mp = _round_up(M, tm)
    a_p = jnp.pad(a.astype(jnp.bfloat16), ((0, 0), (0, Mp - M), (0, 0)))
    b_p = b.astype(jnp.bfloat16)
    out = pl.pallas_call(
        _bmm_kernel,
        out_shape=jax.ShapeDtypeStruct((G, Mp, N), jnp.float32),
        grid=(G, Mp // tm),
        in_specs=[pl.BlockSpec((1, tm, K), lambda g, i: (g, i, 0)),
                  pl.BlockSpec((1, K, N), lambda g, i: (g, 0, 0))],
        out_specs=pl.BlockSpec((1, tm, N), lambda g, i: (g, i, 0)),
        compiler_params=_cparams("parallel", "parallel"),
    )(a_p, b_p)
    return out[:, :M, :]


# ----------------------------------------------------------------------------- #
# 3x3 conv (reflect pad, bias=False): 9 tap matmuls accumulated in-kernel
# (no 9x im2col round-trip through HBM).
# ----------------------------------------------------------------------------- #
def _conv3x3_kernel(x_ref, w_ref, o_ref):
    # x_ref: (1, H+2, W+2, Cin) bf16;  w_ref: (9, Cin, Cout) bf16;  o_ref: (1, H*W, Cout) f32
    Cout = o_ref.shape[2]
    _, Hp, Wp, Cin = x_ref.shape
    H, W = Hp - 2, Wp - 2
    acc = jnp.zeros((H * W, Cout), jnp.float32)
    for t in range(9):
        dy, dx = t // 3, t % 3
        win = x_ref[0, dy:dy + H, dx:dx + W, :].reshape(H * W, Cin)
        acc = acc + jnp.dot(win, w_ref[t], preferred_element_type=jnp.float32)
    o_ref[0] = acc


def conv3x3_reflect(x, w):
    # x: NHWC f32, w: (Cout, Cin, 3, 3)
    B, H, W, Cin = x.shape
    Cout = w.shape[0]
    xp = jnp.pad(x, ((0, 0), (1, 1), (1, 1), (0, 0)), mode="reflect").astype(jnp.bfloat16)
    w_taps = jnp.transpose(w, (2, 3, 1, 0)).reshape(9, Cin, Cout).astype(jnp.bfloat16)
    # TODO(synk): for large H, row-tile the image with a manual 2-row halo DMA instead of one
    #             padded image per grid step.
    out = pl.pallas_call(
        _conv3x3_kernel,
        out_shape=jax.ShapeDtypeStruct((B, H * W, Cout), jnp.float32),
        grid=(B,),
        in_specs=[pl.BlockSpec((1, H + 2, W + 2, Cin), lambda i: (i, 0, 0, 0)),
                  pl.BlockSpec((9, Cin, Cout), lambda i: (0, 0, 0))],
        out_specs=pl.BlockSpec((1, H * W, Cout), lambda i: (i, 0, 0)),
        compiler_params=_cparams("parallel"),
    )(xp, w_taps)
    return out.reshape(B, H, W, Cout)


def conv1x1(x, w):
    # x: NHWC, w: (Cout, Cin), bias=False
    B, H, W, Cin = x.shape
    y = pallas_matmul(x.reshape(B * H * W, Cin), jnp.transpose(w))
    return y.reshape(B, H, W, -1)


# ----------------------------------------------------------------------------- #
# Depthwise 3x3 conv + SiLU (SS2D conv2d).  Elementwise tap accumulation in f32.
# ----------------------------------------------------------------------------- #
def _dwconv_silu_kernel(xp_ref, w_ref, b_ref, o_ref):
    _, H, W, C = o_ref.shape
    acc = jnp.zeros((H, W, C), jnp.float32)
    for idx in range(9):
        dy, dx = idx // 3, idx % 3
        acc = acc + xp_ref[0, dy:dy + H, dx:dx + W, :] * w_ref[idx]
    acc = acc + b_ref[...]
    o_ref[0] = acc * jax.nn.sigmoid(acc)            # fused SiLU


def dwconv3x3_silu(x, w, b):
    # x: NHWC, w: (C,1,3,3), b: (C,); zero padding = 1
    B, H, W, C = x.shape
    xp = jnp.pad(x, ((0, 0), (1, 1), (1, 1), (0, 0)))
    w_taps = jnp.transpose(w, (2, 3, 1, 0)).reshape(9, 1, C)
    # TODO(synk): row-tile with a 2-row halo for large H (whole padded image per step for now).
    return pl.pallas_call(
        _dwconv_silu_kernel,
        out_shape=jax.ShapeDtypeStruct((B, H, W, C), jnp.float32),
        grid=(B,),
        in_specs=[pl.BlockSpec((1, H + 2, W + 2, C), lambda i: (i, 0, 0, 0)),
                  pl.BlockSpec((9, 1, C), lambda i: (0, 0, 0)),
                  pl.BlockSpec((1, C), lambda i: (0, 0))],
        out_specs=pl.BlockSpec((1, H, W, C), lambda i: (i, 0, 0, 0)),
        compiler_params=_cparams("parallel"),
    )(xp, w_taps, b.reshape(1, C))


# ----------------------------------------------------------------------------- #
# Selective scan (Mamba recurrence), lane-dense layout:
#   u/dt/y : (L, G, D)   B/C : (L, G, N)   A : (G, N, D)   state h : (G, N, D)
# with G = batch * 4 directions, D = d_inner (lanes), N = d_state.
# Everything independent of the carried state is hoisted into a prologue kernel.
# ----------------------------------------------------------------------------- #
def _scan_prologue_kernel(dt_ref, u_ref, bias_ref, D_ref, dtsp_ref, dtu_ref, du_ref):
    raw = dt_ref[...] + bias_ref[...]
    # numerically-safe softplus (delta_softplus=True)
    sp = jnp.where(raw > 20.0, raw, jnp.log1p(jnp.exp(jnp.minimum(raw, 20.0))))
    u = u_ref[...]
    dtsp_ref[...] = sp
    dtu_ref[...] = sp * u
    du_ref[...] = D_ref[...] * u


def _selective_scan_kernel(dtsp_ref, dtu_ref, du_ref, B_ref, C_ref, A_ref, y_ref, h_ref):
    @pl.when(pl.program_id(1) == 0)
    def _():
        h_ref[...] = jnp.zeros_like(h_ref)

    A = A_ref[...]                                          # (gc, N, D)
    tl = dtsp_ref.shape[0]

    def body(t, carry):
        dt_t = dtsp_ref[t]                                  # (gc, D)
        dA = jnp.exp(dt_t[:, None, :] * A)                  # (gc, N, D)
        h = dA * h_ref[...] + dtu_ref[t][:, None, :] * B_ref[t][:, :, None]
        h_ref[...] = h
        y_ref[t] = jnp.sum(h * C_ref[t][:, :, None], axis=1) + du_ref[t]
        return carry

    lax.fori_loop(0, tl, body, 0)


def selective_scan(u_l, dt_l, B_l, C_l, A, Ds, delta_bias, Bsz, K):
    """u_l, dt_l: (L, G, D);  B_l, C_l: (L, G, N);  A: (K*D, N);  Ds, delta_bias: (K*D,).
    Returns y: (L, G, D), f32, with delta_softplus=True semantics."""
    L, G, D = u_l.shape
    N = A.shape[1]

    A_g = jnp.tile(jnp.transpose(A.reshape(K, D, N), (0, 2, 1)), (Bsz, 1, 1))   # (G, N, D)
    bias_g = jnp.tile(delta_bias.reshape(K, D), (Bsz, 1)).reshape(1, G, D)
    Ds_g = jnp.tile(Ds.reshape(K, D), (Bsz, 1)).reshape(1, G, D)

    tl = min(128, _round_up(L, 8))
    Lp = _round_up(L, tl)
    pad = ((0, Lp - L), (0, 0), (0, 0))
    u_p, dt_p = jnp.pad(u_l, pad), jnp.pad(dt_l, pad)
    B_p, C_p = jnp.pad(B_l, pad), jnp.pad(C_l, pad)

    # ---- prologue: everything that does not depend on the carried state -------
    dtsp, dtu, du = pl.pallas_call(
        _scan_prologue_kernel,
        out_shape=[jax.ShapeDtypeStruct((Lp, G, D), jnp.float32)] * 3,
        grid=(Lp // tl,),
        in_specs=[pl.BlockSpec((tl, G, D), lambda l: (l, 0, 0)),
                  pl.BlockSpec((tl, G, D), lambda l: (l, 0, 0)),
                  pl.BlockSpec((1, G, D), lambda l: (0, 0, 0)),
                  pl.BlockSpec((1, G, D), lambda l: (0, 0, 0))],
        out_specs=[pl.BlockSpec((tl, G, D), lambda l: (l, 0, 0))] * 3,
        compiler_params=_cparams("parallel"),
    )(dt_p, u_p, bias_g, Ds_g)

    # ---- sequential recurrence over L, optionally sharded over group chunks ---
    gc = G // 2 if (G >= 16 and (G // 2) % 8 == 0) else G

    y = pl.pallas_call(
        _selective_scan_kernel,
        out_shape=jax.ShapeDtypeStruct((Lp, G, D), jnp.float32),
        grid=(G // gc, Lp // tl),
        in_specs=[pl.BlockSpec((tl, gc, D), lambda g, l: (l, g, 0)),
                  pl.BlockSpec((tl, gc, D), lambda g, l: (l, g, 0)),
                  pl.BlockSpec((tl, gc, D), lambda g, l: (l, g, 0)),
                  pl.BlockSpec((tl, gc, N), lambda g, l: (l, g, 0)),
                  pl.BlockSpec((tl, gc, N), lambda g, l: (l, g, 0)),
                  pl.BlockSpec((gc, N, D), lambda g, l: (g, 0, 0))],
        out_specs=pl.BlockSpec((tl, gc, D), lambda g, l: (l, g, 0)),
        scratch_shapes=[pltpu.VMEM((gc, N, D), jnp.float32)],
        compiler_params=_cparams("parallel", "arbitrary"),
    )(dtsp, dtu, du, B_p, C_p, A_g)

    return y[:L]


# ----------------------------------------------------------------------------- #
# LayerNorm * SiLU(z) gate (per-row), tiled over rows
# ----------------------------------------------------------------------------- #
def _ln_gate_kernel(y_ref, z_ref, g_ref, b_ref, o_ref):
    y = y_ref[...]
    mean = jnp.mean(y, axis=1, keepdims=True)
    var = jnp.mean((y - mean) ** 2, axis=1, keepdims=True)
    yn = (y - mean) * lax.rsqrt(var + 1e-5) * g_ref[...] + b_ref[...]
    z = z_ref[...]
    o_ref[...] = yn * (z * jax.nn.sigmoid(z))


def layernorm_silu_gate(y2, z2, gamma, beta):
    M, C = y2.shape
    tm = min(512, _round_up(M, 8))
    Mp = _round_up(M, tm)
    y_p = jnp.pad(y2, ((0, Mp - M), (0, 0)))
    z_p = jnp.pad(z2, ((0, Mp - M), (0, 0)))
    out = pl.pallas_call(
        _ln_gate_kernel,
        out_shape=jax.ShapeDtypeStruct((Mp, C), jnp.float32),
        grid=(Mp // tm,),
        in_specs=[pl.BlockSpec((tm, C), lambda i: (i, 0)),
                  pl.BlockSpec((tm, C), lambda i: (i, 0)),
                  pl.BlockSpec((1, C), lambda i: (0, 0)),
                  pl.BlockSpec((1, C), lambda i: (0, 0))],
        out_specs=pl.BlockSpec((tm, C), lambda i: (i, 0)),
        compiler_params=_cparams("parallel"),
    )(y_p, z_p, gamma.reshape(1, C), beta.reshape(1, C))
    return out[:M]


# ----------------------------------------------------------------------------- #
# Fused affine (scale/shift) + ReLU, tiled; batch statistics reduced in XLA.
# ----------------------------------------------------------------------------- #
def _affine_relu_kernel(x_ref, s_ref, t_ref, o_ref):
    o_ref[...] = jnp.maximum(x_ref[...] * s_ref[...] + t_ref[...], 0.0)


def _affine_relu(x3, scale, shift):
    # x3: (Bo, R, C); scale, shift: (Bo, 1, C)
    Bo, R, C = x3.shape
    tr = min(1024, _round_up(R, 8))
    Rp = _round_up(R, tr)
    x_p = jnp.pad(x3, ((0, 0), (0, Rp - R), (0, 0)))
    out = pl.pallas_call(
        _affine_relu_kernel,
        out_shape=jax.ShapeDtypeStruct((Bo, Rp, C), jnp.float32),
        grid=(Bo, Rp // tr),
        in_specs=[pl.BlockSpec((1, tr, C), lambda b, i: (b, i, 0)),
                  pl.BlockSpec((1, 1, C), lambda b, i: (b, 0, 0)),
                  pl.BlockSpec((1, 1, C), lambda b, i: (b, 0, 0))],
        out_specs=pl.BlockSpec((1, tr, C), lambda b, i: (b, i, 0)),
        compiler_params=_cparams("parallel", "parallel"),
    )(x_p, scale, shift)
    return out[:, :R]


def batchnorm_relu(x, gamma, beta):
    # PyTorch BatchNorm2d *training-mode* (biased batch statistics) + ReLU.
    B, H, W, C = x.shape
    x2 = x.reshape(1, B * H * W, C)
    mean = jnp.mean(x2, axis=(0, 1))
    var = jnp.mean((x2 - mean) ** 2, axis=(0, 1))
    scale = gamma * lax.rsqrt(var + 1e-5)
    shift = beta - mean * scale
    out = _affine_relu(x2, scale.reshape(1, 1, C), shift.reshape(1, 1, C))
    return out.reshape(B, H, W, C)


def groupnorm_relu(x, gamma, beta, groups):
    B, H, W, C = x.shape
    Cg = C // groups
    xg = x.reshape(B, H * W, groups, Cg)
    mean_g = jnp.mean(xg, axis=(1, 3))                                   # (B, G)
    var_g = jnp.mean((xg - mean_g[:, None, :, None]) ** 2, axis=(1, 3))  # two-pass, stable
    mean_c = jnp.repeat(mean_g, Cg, axis=1)                              # (B, C)
    var_c = jnp.repeat(var_g, Cg, axis=1)
    scale = gamma[None, :] * lax.rsqrt(var_c + 1e-5)
    shift = beta[None, :] - mean_c * scale
    out = _affine_relu(x.reshape(B, H * W, C), scale[:, None, :], shift[:, None, :])
    return out.reshape(B, H, W, C)


# ----------------------------------------------------------------------------- #
# Module forwards (JAX glue orchestrating the Pallas kernels)
# ----------------------------------------------------------------------------- #
def ss2d_forward(p, x_seq, H, W):
    Bsz, Ntok, Cm = x_seq.shape
    d_inner = p["conv2d_w"].shape[0]
    d_state = p["A_logs"].shape[1]
    dt_rank = p["dt_projs_w"].shape[2]
    K = 4
    L = H * W

    # reproduces torch: x.permute(0,2,1).reshape(B,H,W,C)
    x_in = jnp.transpose(x_seq, (0, 2, 1)).reshape(Bsz, H, W, Cm)

    xz = pallas_matmul(x_in.reshape(Bsz * Ntok, Cm), jnp.transpose(p["in_proj_w"]))
    xz = xz.reshape(Bsz, H, W, 2 * d_inner)
    x, z = xz[..., :d_inner], xz[..., d_inner:]

    x = dwconv3x3_silu(x, p["conv2d_w"], p["conv2d_b"])          # act(conv2d(x))

    # forward_corev0: build the 4 scan directions
    x_chw = jnp.transpose(x, (0, 3, 1, 2))                       # (B, d, H, W)
    x_hw = x_chw.reshape(Bsz, d_inner, L)
    x_wh = jnp.transpose(x_chw, (0, 1, 3, 2)).reshape(Bsz, d_inner, L)
    x_hwwh = jnp.stack([x_hw, x_wh], axis=1)                     # (B, 2, d, L)
    xs = jnp.concatenate([x_hwwh, jnp.flip(x_hwwh, axis=-1)], axis=1)  # (B, 4, d, L)

    # Fuse dt_proj into x_proj:  per direction k,  x @ W_comb[k] = [dt_full | B | C]
    W_dt = jnp.einsum("krd,ker->kde",
                      p["x_proj_w"][:, :dt_rank, :], p["dt_projs_w"])          # (K, d, d)
    W_B = jnp.transpose(p["x_proj_w"][:, dt_rank:dt_rank + d_state, :], (0, 2, 1))
    W_C = jnp.transpose(p["x_proj_w"][:, dt_rank + d_state:, :], (0, 2, 1))
    W_comb = jnp.concatenate([W_dt, W_B, W_C], axis=2)                          # (K, d, d+2N)

    xs_k = jnp.transpose(xs, (1, 0, 3, 2)).reshape(K, Bsz * L, d_inner)
    dtBC = pallas_bmm(xs_k, W_comb)                                             # (K, B*L, d+2N)
    dtBC = jnp.transpose(dtBC.reshape(K, Bsz, L, d_inner + 2 * d_state),
                         (2, 1, 0, 3)).reshape(L, Bsz * K, d_inner + 2 * d_state)

    dt_l = dtBC[..., :d_inner]                                   # (L, G, D)
    B_l = dtBC[..., d_inner:d_inner + d_state]                   # (L, G, N)
    C_l = dtBC[..., d_inner + d_state:]                          # (L, G, N)
    u_l = jnp.transpose(xs, (3, 0, 1, 2)).reshape(L, Bsz * K, d_inner)

    As = -jnp.exp(p["A_logs"])                                   # (K*d, N)
    y_l = selective_scan(u_l, dt_l, B_l, C_l, As, p["Ds"],
                         p["dt_projs_b"].reshape(-1), Bsz, K)    # (L, G, D)

    out_y = jnp.transpose(y_l.reshape(L, Bsz, K, d_inner), (1, 2, 3, 0))   # (B, K, d, L)

    inv_y = jnp.flip(out_y[:, 2:4], axis=-1)
    wh_y = jnp.transpose(out_y[:, 1].reshape(Bsz, d_inner, W, H), (0, 1, 3, 2)).reshape(Bsz, d_inner, L)
    invwh_y = jnp.transpose(inv_y[:, 1].reshape(Bsz, d_inner, W, H), (0, 1, 3, 2)).reshape(Bsz, d_inner, L)

    y = out_y[:, 0] + inv_y[:, 0] + wh_y + invwh_y               # (B, d, L)
    y2 = jnp.transpose(y, (0, 2, 1)).reshape(Bsz * L, d_inner)
    z2 = z.reshape(Bsz * L, d_inner)
    yg = layernorm_silu_gate(y2, z2, p["ln_gamma"], p["ln_beta"])
    out = pallas_matmul(yg, jnp.transpose(p["out_proj_w"]))      # (B*L, d_model)
    return out.reshape(Bsz, Ntok, Cm)


def fe_ss2d_forward(p, x_g):
    # FeatureEnhancementSS2DConv, NHWC input (B, H, W, in_cg)
    B, H, W, _ = x_g.shape
    h1 = conv1x1(x_g, p["conv1_w"])
    h1 = groupnorm_relu(h1, p["gn_gamma"], p["gn_beta"], groups=3)
    x_seq = h1.reshape(B, H * W, h1.shape[-1])
    ssd = ss2d_forward(p["ss2d"], x_seq, H, W)
    rec = ssd.reshape(B, H, W, -1)
    return conv1x1(h1 + rec, p["conv3_w"])


def dualconv_forward(p, x_l, x_g):
    out_xl = conv3x3_reflect(x_l, p["w_l2l"]) + conv3x3_reflect(x_g, p["w_g2l"])
    out_xg = conv3x3_reflect(x_l, p["w_l2g"]) + fe_ss2d_forward(p["fe"], x_g)
    return out_xl, out_xg


def unit_forward(p, x_l, x_g):
    x_l, x_g = dualconv_forward(p["dual"], x_l, x_g)
    x_l = batchnorm_relu(x_l, p["bn_l_g"], p["bn_l_b"])
    x_g = batchnorm_relu(x_g, p["bn_g_g"], p["bn_g_b"])
    return x_l, x_g


def block_forward(p, x_l, x_g):
    id_l, id_g = x_l, x_g
    x_l, x_g = unit_forward(p["conv1"], x_l, x_g)
    x_l, x_g = unit_forward(p["conv2"], x_l, x_g)
    return id_l + x_l, id_g + x_g


def subnet_forward(params, x_nchw):
    x = jnp.transpose(x_nchw.astype(jnp.float32), (0, 2, 3, 1))  # NCHW -> NHWC
    n_feat = x.shape[-1]
    in_cg = int(n_feat * 0.75)
    x_l, x_g = x[..., :n_feat - in_cg], x[..., n_feat - in_cg:]  # block1 inline split
    x_l, x_g = block_forward(params["block1"], x_l, x_g)
    x_l, x_g = block_forward(params["block2"], x_l, x_g)
    out = jnp.concatenate([x_l, x_g], axis=-1)                   # block2 outline cat
    return jnp.transpose(out, (0, 3, 1, 2))                      # back to NCHW


# ----------------------------------------------------------------------------- #
# Deterministic parameter initialization (shapes follow the PyTorch __init__)
# ----------------------------------------------------------------------------- #
def _uniform(key, shape, scale):
    return jax.random.uniform(key, shape, jnp.float32, -scale, scale)


def init_ss2d(key, d_model, d_state=16, d_conv=3, expand=2):
    d_inner = expand * d_model
    dt_rank = math.ceil(d_model / 16)
    ks = jax.random.split(key, 8)
    dt_min, dt_max, dt_floor = 0.001, 0.1, 1e-4
    dt = jnp.exp(jax.random.uniform(ks[5], (4, d_inner)) *
                 (math.log(dt_max) - math.log(dt_min)) + math.log(dt_min))
    dt = jnp.maximum(dt, dt_floor)
    inv_dt = dt + jnp.log(-jnp.expm1(-dt))
    A_logs = jnp.tile(jnp.log(jnp.arange(1, d_state + 1, dtype=jnp.float32)), (4 * d_inner, 1))
    return dict(
        in_proj_w=_uniform(ks[0], (2 * d_inner, d_model), 1.0 / math.sqrt(d_model)),
        conv2d_w=_uniform(ks[1], (d_inner, 1, d_conv, d_conv), 1.0 / math.sqrt(d_conv * d_conv)),
        conv2d_b=_uniform(ks[2], (d_inner,), 1.0 / math.sqrt(d_conv * d_conv)),
        x_proj_w=_uniform(ks[3], (4, dt_rank + 2 * d_state, d_inner), 1.0 / math.sqrt(d_inner)),
        dt_projs_w=_uniform(ks[4], (4, d_inner, dt_rank), dt_rank ** -0.5),
        dt_projs_b=inv_dt,
        A_logs=A_logs,
        Ds=jnp.ones((4 * d_inner,), jnp.float32),
        ln_gamma=jnp.ones((d_inner,), jnp.float32),
        ln_beta=jnp.zeros((d_inner,), jnp.float32),
        out_proj_w=_uniform(ks[6], (d_model, d_inner), 1.0 / math.sqrt(d_inner)),
    )


def init_fe(key, in_ch, out_ch):
    ks = jax.random.split(key, 3)
    half = out_ch // 2
    return dict(
        conv1_w=_uniform(ks[0], (half, in_ch), 1.0 / math.sqrt(in_ch)),
        gn_gamma=jnp.ones((half,), jnp.float32),
        gn_beta=jnp.zeros((half,), jnp.float32),
        ss2d=init_ss2d(ks[1], in_ch // 2),
        conv3_w=_uniform(ks[2], (out_ch, half), 1.0 / math.sqrt(half)),
    )


def _init_conv3x3(key, cout, cin):
    return _uniform(key, (cout, cin, 3, 3), 1.0 / math.sqrt(cin * 9))


def init_dual(key, in_ch, out_ch):
    in_cg = int(in_ch * 0.75)
    in_cl = in_ch - in_cg
    out_cg = int(out_ch * 0.75)
    out_cl = out_ch - out_cg
    ks = jax.random.split(key, 4)
    return dict(
        w_l2l=_init_conv3x3(ks[0], out_cl, in_cl),
        w_l2g=_init_conv3x3(ks[1], out_cg, in_cl),
        w_g2l=_init_conv3x3(ks[2], out_cl, in_cg),
        fe=init_fe(ks[3], in_cg, out_cg),
    )


def init_unit(key, in_ch, out_ch):
    out_cg = int(out_ch * 0.75)
    out_cl = out_ch - out_cg
    return dict(
        dual=init_dual(key, in_ch, out_ch),
        bn_l_g=jnp.ones((out_cl,), jnp.float32), bn_l_b=jnp.zeros((out_cl,), jnp.float32),
        bn_g_g=jnp.ones((out_cg,), jnp.float32), bn_g_b=jnp.zeros((out_cg,), jnp.float32),
    )


def init_block(key, dim):
    k1, k2 = jax.random.split(key)
    return dict(conv1=init_unit(k1, dim, dim), conv2=init_unit(k2, dim, dim))


def init_subnet(key, n_feat):
    k1, k2 = jax.random.split(key)
    return dict(block1=init_block(k1, n_feat), block2=init_block(k2, n_feat))


# ----------------------------------------------------------------------------- #
if __name__ == "__main__":
    key = jax.random.PRNGKey(0)
    kp, kx = jax.random.split(key)

    # n_feat must be a multiple of 8 so GroupNorm(3, out_cg//2) divides evenly.
    n_feat, Bsz, H, W = 8, 2, 8, 8
    params = init_subnet(kp, n_feat)
    x = jax.random.normal(kx, (Bsz, n_feat, H, W), jnp.float32)  # NCHW, like PyTorch

    out = subnet_forward(params, x)
    out = jax.block_until_ready(out)
    assert out.shape == (Bsz, n_feat, H, W)
    assert bool(jnp.all(jnp.isfinite(out)))
    print("KERNEL_OK")
</pallas_src>

<mosaic_0001>
module attributes {stable_mosaic.version = 11 : i64} {
  func.func @_conv3x3_kernel(%arg0: i32, %arg1: memref<1x10x10x2xbf16, #tpu.memory_space<vmem>>, %arg2: memref<9x2x2xbf16, #tpu.memory_space<vmem>>, %arg3: memref<1x64x2xf32, #tpu.memory_space<vmem>>) attributes {dimension_semantics = [#tpu.dimension_semantics<parallel>], iteration_bounds = array<i64: 2>, scalar_prefetch = 0 : i64, scratch_operands = 0 : i64, tpu.core_type = #tpu.core_type<tc>, window_params = [{transform_indices = @transform_0, window_bounds = array<i64: 1, 10, 10, 2>}, {pipeline_mode = #tpu.pipeline_mode<synchronous>, transform_indices = @transform_1, window_bounds = array<i64: 9, 2, 2>}, {transform_indices = @transform_2, window_bounds = array<i64: 1, 64, 2>}]} {
    %cst = arith.constant 0.000000e+00 : f32
    %0 = vector.broadcast %cst : f32 to vector<64x2xf32>
    %c0 = arith.constant 0 : index
    %c0_0 = arith.constant 0 : index
    %c0_1 = arith.constant 0 : index
    %c0_2 = arith.constant 0 : index
    %1 = vector.load %arg1[%c0, %c0_0, %c0_1, %c0_2] : memref<1x10x10x2xbf16, #tpu.memory_space<vmem>>, vector<1x8x8x2xbf16>
    %2 = vector.shape_cast %1 : vector<1x8x8x2xbf16> to vector<8x8x2xbf16>
    %3 = vector.shape_cast %2 : vector<8x8x2xbf16> to vector<64x2xbf16>
    %c0_3 = arith.constant 0 : index
    %c0_4 = arith.constant 0 : index
    %c0_5 = arith.constant 0 : index
    %4 = vector.load %arg2[%c0_3, %c0_4, %c0_5] : memref<9x2x2xbf16, #tpu.memory_space<vmem>>, vector<1x2x2xbf16>
    %5 = vector.shape_cast %4 : vector<1x2x2xbf16> to vector<2x2xbf16>
    %cst_6 = arith.constant dense<0.000000e+00> : vector<64x2xf32>
    %6 = tpu.matmul %3, %5, %cst_6 {dimension_numbers = #tpu.dot_dimension_numbers<[1], [0], [0], [1], [0, 0, 1, 1], [], []>} : vector<64x2xbf16>, vector<2x2xbf16>, vector<64x2xf32> -> vector<64x2xf32>
    %7 = arith.addf %0, %6 : vector<64x2xf32>
    %c0_7 = arith.constant 0 : index
    %c0_8 = arith.constant 0 : index
    %c1 = arith.constant 1 : index
    %c0_9 = arith.constant 0 : index
    %8 = vector.load %arg1[%c0_7, %c0_8, %c1, %c0_9] : memref<1x10x10x2xbf16, #tpu.memory_space<vmem>>, vector<1x8x8x2xbf16>
    %9 = vector.shape_cast %8 : vector<1x8x8x2xbf16> to vector<8x8x2xbf16>
    %10 = vector.shape_cast %9 : vector<8x8x2xbf16> to vector<64x2xbf16>
    %c1_10 = arith.constant 1 : index
    %c0_11 = arith.constant 0 : index
    %c0_12 = arith.constant 0 : index
    %11 = vector.load %arg2[%c1_10, %c0_11, %c0_12] : memref<9x2x2xbf16, #tpu.memory_space<vmem>>, vector<1x2x2xbf16>
    %12 = vector.shape_cast %11 : vector<1x2x2xbf16> to vector<2x2xbf16>
    %cst_13 = arith.constant dense<0.000000e+00> : vector<64x2xf32>
    %13 = tpu.matmul %10, %12, %cst_13 {dimension_numbers = #tpu.dot_dimension_numbers<[1], [0], [0], [1], [0, 0, 1, 1], [], []>} : vector<64x2xbf16>, vector<2x2xbf16>, vector<64x2xf32> -> vector<64x2xf32>
    %14 = arith.addf %7, %13 : vector<64x2xf32>
    %c0_14 = arith.constant 0 : index
    %c0_15 = arith.constant 0 : index
    %c2 = arith.constant 2 : index
    %c0_16 = arith.constant 0 : index
    %15 = vector.load %arg1[%c0_14, %c0_15, %c2, %c0_16] : memref<1x10x10x2xbf16, #tpu.memory_space<vmem>>, vector<1x8x8x2xbf16>
    %16 = vector.shape_cast %15 : vector<1x8x8x2xbf16> to vector<8x8x2xbf16>
    %17 = vector.shape_cast %16 : vector<8x8x2xbf16> to vector<64x2xbf16>
    %c2_17 = arith.constant 2 : index
    %c0_18 = arith.constant 0 : index
    %c0_19 = arith.constant 0 : index
    %18 = vector.load %arg2[%c2_17, %c0_18, %c0_19] : memref<9x2x2xbf16, #tpu.memory_space<vmem>>, vector<1x2x2xbf16>
    %19 = vector.shape_cast %18 : vector<1x2x2xbf16> to vector<2x2xbf16>
    %cst_20 = arith.constant dense<0.000000e+00> : vector<64x2xf32>
    %20 = tpu.matmul %17, %19, %cst_20 {dimension_numbers = #tpu.dot_dimension_numbers<[1], [0], [0], [1], [0, 0, 1, 1], [], []>} : vector<64x2xbf16>, vector<2x2xbf16>, vector<64x2xf32> -> vector<64x2xf32>
    %21 = arith.addf %14, %20 : vector<64x2xf32>
    %c0_21 = arith.constant 0 : index
    %c1_22 = arith.constant 1 : index
    %c0_23 = arith.constant 0 : index
    %c0_24 = arith.constant 0 : index
    %22 = vector.load %arg1[%c0_21, %c1_22, %c0_23, %c0_24] : memref<1x10x10x2xbf16, #tpu.memory_space<vmem>>, vector<1x8x8x2xbf16>
    %23 = vector.shape_cast %22 : vector<1x8x8x2xbf16> to vector<8x8x2xbf16>
    %24 = vector.shape_cast %23 : vector<8x8x2xbf16> to vector<64x2xbf16>
    %c3 = arith.constant 3 : index
    %c0_25 = arith.constant 0 : index
    %c0_26 = arith.constant 0 : index
    %25 = vector.load %arg2[%c3, %c0_25, %c0_26] : memref<9x2x2xbf16, #tpu.memory_space<vmem>>, vector<1x2x2xbf16>
    %26 = vector.shape_cast %25 : vector<1x2x2xbf16> to vector<2x2xbf16>
    %cst_27 = arith.constant dense<0.000000e+00> : vector<64x2xf32>
    %27 = tpu.matmul %24, %26, %cst_27 {dimension_numbers = #tpu.dot_dimension_numbers<[1], [0], [0], [1], [0, 0, 1, 1], [], []>} : vector<64x2xbf16>, vector<2x2xbf16>, vector<64x2xf32> -> vector<64x2xf32>
    %28 = arith.addf %21, %27 : vector<64x2xf32>
    %c0_28 = arith.constant 0 : index
    %c1_29 = arith.constant 1 : index
    %c1_30 = arith.constant 1 : index
    %c0_31 = arith.constant 0 : index
    %29 = vector.load %arg1[%c0_28, %c1_29, %c1_30, %c0_31] : memref<1x10x10x2xbf16, #tpu.memory_space<vmem>>, vector<1x8x8x2xbf16>
    %30 = vector.shape_cast %29 : vector<1x8x8x2xbf16> to vector<8x8x2xbf16>
    %31 = vector.shape_cast %30 : vector<8x8x2xbf16> to vector<64x2xbf16>
    %c4 = arith.constant 4 : index
    %c0_32 = arith.constant 0 : index
    %c0_33 = arith.constant 0 : index
    %32 = vector.load %arg2[%c4, %c0_32, %c0_33] : memref<9x2x2xbf16, #tpu.memory_space<vmem>>, vector<1x2x2xbf16>
    %33 = vector.shape_cast %32 : vector<1x2x2xbf16> to vector<2x2xbf16>
    %cst_34 = arith.constant dense<0.000000e+00> : vector<64x2xf32>
    %34 = tpu.matmul %31, %33, %cst_34 {dimension_numbers = #tpu.dot_dimension_numbers<[1], [0], [0], [1], [0, 0, 1, 1], [], []>} : vector<64x2xbf16>, vector<2x2xbf16>, vector<64x2xf32> -> vector<64x2xf32>
    %35 = arith.addf %28, %34 : vector<64x2xf32>
    %c0_35 = arith.constant 0 : index
    %c1_36 = arith.constant 1 : index
    %c2_37 = arith.constant 2 : index
    %c0_38 = arith.constant 0 : index
    %36 = vector.load %arg1[%c0_35, %c1_36, %c2_37, %c0_38] : memref<1x10x10x2xbf16, #tpu.memory_space<vmem>>, vector<1x8x8x2xbf16>
    %37 = vector.shape_cast %36 : vector<1x8x8x2xbf16> to vector<8x8x2xbf16>
    %38 = vector.shape_cast %37 : vector<8x8x2xbf16> to vector<64x2xbf16>
    %c5 = arith.constant 5 : index
    %c0_39 = arith.constant 0 : index
    %c0_40 = arith.constant 0 : index
    %39 = vector.load %arg2[%c5, %c0_39, %c0_40] : memref<9x2x2xbf16, #tpu.memory_space<vmem>>, vector<1x2x2xbf16>
    %40 = vector.shape_cast %39 : vector<1x2x2xbf16> to vector<2x2xbf16>
    %cst_41 = arith.constant dense<0.000000e+00> : vector<64x2xf32>
    %41 = tpu.matmul %38, %40, %cst_41 {dimension_numbers = #tpu.dot_dimension_numbers<[1], [0], [0], [1], [0, 0, 1, 1], [], []>} : vector<64x2xbf16>, vector<2x2xbf16>, vector<64x2xf32> -> vector<64x2xf32>
    %42 = arith.addf %35, %41 : vector<64x2xf32>
    %c0_42 = arith.constant 0 : index
    %c2_43 = arith.constant 2 : index
    %c0_44 = arith.constant 0 : index
    %c0_45 = arith.constant 0 : index
    %43 = vector.load %arg1[%c0_42, %c2_43, %c0_44, %c0_45] : memref<1x10x10x2xbf16, #tpu.memory_space<vmem>>, vector<1x8x8x2xbf16>
    %44 = vector.shape_cast %43 : vector<1x8x8x2xbf16> to vector<8x8x2xbf16>
    %45 = vector.shape_cast %44 : vector<8x8x2xbf16> to vector<64x2xbf16>
    %c6 = arith.constant 6 : index
    %c0_46 = arith.constant 0 : index
    %c0_47 = arith.constant 0 : index
    %46 = vector.load %arg2[%c6, %c0_46, %c0_47] : memref<9x2x2xbf16, #tpu.memory_space<vmem>>, vector<1x2x2xbf16>
    %47 = vector.shape_cast %46 : vector<1x2x2xbf16> to vector<2x2xbf16>
    %cst_48 = arith.constant dense<0.000000e+00> : vector<64x2xf32>
    %48 = tpu.matmul %45, %47, %cst_48 {dimension_numbers = #tpu.dot_dimension_numbers<[1], [0], [0], [1], [0, 0, 1, 1], [], []>} : vector<64x2xbf16>, vector<2x2xbf16>, vector<64x2xf32> -> vector<64x2xf32>
    %49 = arith.addf %42, %48 : vector<64x2xf32>
    %c0_49 = arith.constant 0 : index
    %c2_50 = arith.constant 2 : index
    %c1_51 = arith.constant 1 : index
    %c0_52 = arith.constant 0 : index
    %50 = vector.load %arg1[%c0_49, %c2_50, %c1_51, %c0_52] : memref<1x10x10x2xbf16, #tpu.memory_space<vmem>>, vector<1x8x8x2xbf16>
    %51 = vector.shape_cast %50 : vector<1x8x8x2xbf16> to vector<8x8x2xbf16>
    %52 = vector.shape_cast %51 : vector<8x8x2xbf16> to vector<64x2xbf16>
    %c7 = arith.constant 7 : index
    %c0_53 = arith.constant 0 : index
    %c0_54 = arith.constant 0 : index
    %53 = vector.load %arg2[%c7, %c0_53, %c0_54] : memref<9x2x2xbf16, #tpu.memory_space<vmem>>, vector<1x2x2xbf16>
    %54 = vector.shape_cast %53 : vector<1x2x2xbf16> to vector<2x2xbf16>
    %cst_55 = arith.constant dense<0.000000e+00> : vector<64x2xf32>
    %55 = tpu.matmul %52, %54, %cst_55 {dimension_numbers = #tpu.dot_dimension_numbers<[1], [0], [0], [1], [0, 0, 1, 1], [], []>} : vector<64x2xbf16>, vector<2x2xbf16>, vector<64x2xf32> -> vector<64x2xf32>
    %56 = arith.addf %49, %55 : vector<64x2xf32>
    %c0_56 = arith.constant 0 : index
    %c2_57 = arith.constant 2 : index
    %c2_58 = arith.constant 2 : index
    %c0_59 = arith.constant 0 : index
    %57 = vector.load %arg1[%c0_56, %c2_57, %c2_58, %c0_59] : memref<1x10x10x2xbf16, #tpu.memory_space<vmem>>, vector<1x8x8x2xbf16>
    %58 = vector.shape_cast %57 : vector<1x8x8x2xbf16> to vector<8x8x2xbf16>
    %59 = vector.shape_cast %58 : vector<8x8x2xbf16> to vector<64x2xbf16>
    %c8 = arith.constant 8 : index
    %c0_60 = arith.constant 0 : index
    %c0_61 = arith.constant 0 : index
    %60 = vector.load %arg2[%c8, %c0_60, %c0_61] : memref<9x2x2xbf16, #tpu.memory_space<vmem>>, vector<1x2x2xbf16>
    %61 = vector.shape_cast %60 : vector<1x2x2xbf16> to vector<2x2xbf16>
    %cst_62 = arith.constant dense<0.000000e+00> : vector<64x2xf32>
    %62 = tpu.matmul %59, %61, %cst_62 {dimension_numbers = #tpu.dot_dimension_numbers<[1], [0], [0], [1], [0, 0, 1, 1], [], []>} : vector<64x2xbf16>, vector<2x2xbf16>, vector<64x2xf32> -> vector<64x2xf32>
    %63 = arith.addf %56, %62 : vector<64x2xf32>
    %c0_63 = arith.constant 0 : index
    %c0_64 = arith.constant 0 : index
    %c0_65 = arith.constant 0 : index
    %64 = vector.load %arg3[%c0_63, %c0_64, %c0_65] : memref<1x64x2xf32, #tpu.memory_space<vmem>>, vector<1x64x2xf32>
    %65 = vector.shape_cast %64 : vector<1x64x2xf32> to vector<64x2xf32>
    %66 = vector.shape_cast %63 : vector<64x2xf32> to vector<1x64x2xf32>
    tpu.vector_store %arg3[%c0_63, %c0_64, %c0_65], %66 {strides = array<i32>} : memref<1x64x2xf32, #tpu.memory_space<vmem>>, vector<1x64x2xf32>,
    return
  }
  func.func @transform_0(%arg0: i32) -> (i32, i32, i32, i32) {
    %c0_i32 = arith.constant 0 : i32
    %c0_i32_0 = arith.constant 0 : i32
    %c0_i32_1 = arith.constant 0 : i32
    %c0_i32_2 = arith.constant 0 : i32
    return %arg0, %c0_i32, %c0_i32_0, %c0_i32_1 : i32, i32, i32, i32
  }
  func.func @transform_1(%arg0: i32) -> (i32, i32, i32) {
    %c0_i32 = arith.constant 0 : i32
    %c0_i32_0 = arith.constant 0 : i32
    %c0_i32_1 = arith.constant 0 : i32
    %c0_i32_2 = arith.constant 0 : i32
    return %c0_i32, %c0_i32_0, %c0_i32_1 : i32, i32, i32
  }
  func.func @transform_2(%arg0: i32) -> (i32, i32, i32) {
    %c0_i32 = arith.constant 0 : i32
    %c0_i32_0 = arith.constant 0 : i32
    %c0_i32_1 = arith.constant 0 : i32
    return %arg0, %c0_i32, %c0_i32_0 : i32, i32, i32
  }
}

</mosaic_0001>

<llo_original>
// kernel: tpu_custom_call.1
$region0: #{tpu_custom_call.1}
  #allocation0 [shape = 'u32[]', space=smem, size = 0x4, offset = 0x4, fixed_abs, tag = 'smem constant byte address 0x4 - core index']
  #allocation1 [shape = 'u32[72,128]{1,0:T(1,128)}', space=vmem, size = 0x9000, scoped, tag = 'internal scratch']
  %s0 = inlined_call_operand.vmem [shape: bf16[2,10,10,2], index: 0, kind: input, shape index: {}]
  %s1 = inlined_call_operand.vmem [shape: bf16[9,2,2], index: 1, kind: input, shape index: {}]
  %s2 = inlined_call_operand.vmem [shape: f32[2,64,2], index: 2, kind: output, shape index: {}]
  %s3 = sld [smem:[#allocation0]]
  $region41: #{tpu_custom_call.1} parent=0
    _
  %s5 = ssub.s32 1, %s3
  %s6 = scalar_select 0, %s5, %s3
  loop: start=0, step=1, limit=4
  $region2: #{tpu_custom_call.1} parent=0 // loop_pre_header
    _
  $region3: #{tpu_custom_call.1} parent=0 // loop_header
    %s8 = sphi 0, %s12
    %p9 = scmp.ge.s32.totalorder %s8, 4
    %s18 = sphi 0, %s20
    %s21 = sphi 0, %s18
    %s22 = sphi 0, %s21
    %s38 = sphi 0, %s22
    %s42 = sphi 0, %s42
    %s44 = sphi 0, %s42
    %s45 = sphi 0, %s44
    %s59 = sphi 0, %s45
    %s65 = sphi 0, %s67
    %s68 = sphi 0, %s65
    %s69 = sphi 0, %s68
    %s85 = sphi 0, %s69
  $region4: #{tpu_custom_call.1} parent=0 // loop_header_branch
    %11 = sbr.rel (%p9) target = $region8
  $region5: #{tpu_custom_call.1} parent=0 // loop_body
    %s13 = ssub.s32 %s8, 1
    %s14 = ssub.s32 %s8, 2
    %s15 = sadd.s32 %s8, 1
    %s16 = ssub.s32 %s8, %s15
    %p17 = scmp.eq.s32.totalorder %s16, 0
    %s19 = sadd.s32 %s18, 1
    %s20 = scalar_select %p17, %s18, %s19
    %p23 = pneg %p17
    %p24 = scmp.eq.s32.totalorder %s8, 1
    %p25 = por %p23, %p24
    %p26 = scmp.ne.s32.totalorder %s18, %s21
    %p27 = scmp.eq.s32.totalorder %s8, 0
    %p28 = por %p26, %p27
    %p29 = scmp.ne.s32.totalorder %s18, %s21
    %p30 = scmp.eq.s32.totalorder %s13, 1
    %p31 = por %p29, %p30
    %p32 = scmp.ne.s32.totalorder %s21, %s22
    %p33 = scmp.eq.s32.totalorder %s13, 0
    %p34 = por %p32, %p33
    %p35 = scmp.ne.s32.totalorder %s21, %s22
    %p36 = scmp.eq.s32.totalorder %s14, 1
    %p37 = por %p35, %p36
    %p39 = scmp.ne.s32.totalorder %s22, %s38
    %p40 = scmp.eq.s32.totalorder %s14, 0
    %p41 = por %p39, %p40
    %s43 = sadd.s32 %s42, 1
    %p46 = scmp.eq.s32.totalorder %s8, 1
    %p47 = scmp.ne.s32.totalorder %s42, %s44
    %p48 = scmp.eq.s32.totalorder %s8, 0
    %p49 = por %p47, %p48
    %p50 = scmp.ne.s32.totalorder %s42, %s44
    %p51 = scmp.eq.s32.totalorder %s13, 1
    %p52 = por %p50, %p51
    %p53 = scmp.ne.s32.totalorder %s44, %s45
    %p54 = scmp.eq.s32.totalorder %s13, 0
    %p55 = por %p53, %p54
    %p56 = scmp.ne.s32.totalorder %s44, %s45
    %p57 = scmp.eq.s32.totalorder %s14, 1
    %p58 = por %p56, %p57
    %p60 = scmp.ne.s32.totalorder %s45, %s59
    %p61 = scmp.eq.s32.totalorder %s14, 0
    %p62 = por %p60, %p61
    %s63 = ssub.s32 %s8, %s15
    %p64 = scmp.eq.s32.totalorder %s63, 0
    %s66 = sadd.s32 %s65, 1
    %s67 = scalar_select %p64, %s65, %s66
    %p70 = pneg %p64
    %p71 = scmp.eq.s32.totalorder %s8, 1
    %p72 = por %p70, %p71
    %p73 = scmp.ne.s32.totalorder %s65, %s68
    %p74 = scmp.eq.s32.totalorder %s8, 0
    %p75 = por %p73, %p74
    %p76 = scmp.ne.s32.totalorder %s65, %s68
    %p77 = scmp.eq.s32.totalorder %s13, 1
    %p78 = por %p76, %p77
    %p79 = scmp.ne.s32.totalorder %s68, %s69
    %p80 = scmp.eq.s32.totalorder %s13, 0
    %p81 = por %p79, %p80
    %p82 = scmp.ne.s32.totalorder %s68, %s69
    %p83 = scmp.eq.s32.totalorder %s14, 1
    %p84 = por %p82, %p83
    %p86 = scmp.ne.s32.totalorder %s69, %s85
    %p87 = scmp.eq.s32.totalorder %s14, 0
    %p88 = por %p86, %p87
    %p89 = scmp.le.s32.totalorder 1, %s8
    %p90 = scmp.lt.s32.totalorder %s8, 3
    %p91 = pnand %p89, %p90
    %p92 = pneg %p91
    // Predicated region
    $region9: #{tpu_custom_call.1} parent=5 // pred_check
      _
    $region10: #{tpu_custom_call.1} parent=5 // pred_check_branch
      %94 = sbr.rel (%p91) target = $region12
    $region11: #{tpu_custom_call.1} parent=5 // pred_region
      %s95 = ssub.s32 %s8, 1
      // Predicated region
      $region13: #{tpu_custom_call.1} parent=11 // pred_check
        %p96 = pneg %p55
      $region14: #{tpu_custom_call.1} parent=11 // pred_check_branch
        %98 = sbr.rel (%p96) target = $region16
      $region15: #{tpu_custom_call.1} parent=11 // pred_region
        _
      $region16: #{tpu_custom_call.1} parent=11 // pred_fallthru
        _
    $region12: #{tpu_custom_call.1} parent=5 // pred_fallthru
      _
    %p99 = scmp.lt.s32.totalorder %s8, 2
    // Predicated region
    $region17: #{tpu_custom_call.1} parent=5 // pred_check
      %p100 = pneg %p99
    $region18: #{tpu_custom_call.1} parent=5 // pred_check_branch
      %102 = sbr.rel (%p100) target = $region20
    $region19: #{tpu_custom_call.1} parent=5 // pred_region
      // Predicated region
      $region21: #{tpu_custom_call.1} parent=19 // pred_check
        %p103 = pneg %p28
      $region22: #{tpu_custom_call.1} parent=19 // pred_check_branch
        %105 = sbr.rel (%p103) target = $region24
      $region23: #{tpu_custom_call.1} parent=19 // pred_region
        %p106 = scmp.lt.s32.totalorder %s8, 1
        %s107 = scalar_select %p106, %s8, 1
        %s108 = smul.addr %s107, 20
        %s109 = smul.addr %s108, 4
        %s110 = scalar_lea.vmem %s0, %s109
      $region24: #{tpu_custom_call.1} parent=19 // pred_fallthru
        _
    $region20: #{tpu_custom_call.1} parent=5 // pred_fallthru
      _
    %p111 = scmp.le.s32.totalorder 1, %s8
    %p112 = scmp.lt.s32.totalorder %s8, 3
    %p113 = pnand %p111, %p112
    %p114 = pneg %p113
    // Predicated region
    $region25: #{tpu_custom_call.1} parent=5 // pred_check
      _
    $region26: #{tpu_custom_call.1} parent=5 // pred_check_branch
      %116 = sbr.rel (%p113) target = $region28
    $region27: #{tpu_custom_call.1} parent=5 // pred_region
      %s117 = ssub.s32 %s8, 1
      %p118 = scmp.lt.s32.totalorder %s13, 1
      %s119 = scalar_select %p118, %s13, 1
      %s120 = smul.addr %s119, 20
      %s121 = smul.addr %s120, 4
      %s122 = scalar_lea.vmem %s0, %s121
      %p123 = pneg %p34
      %p124 = pneg %p31
      %p125 = pneg %p55
      %p126 = pneg %p52
      %p127 = pneg %p81
      %p128 = pneg %p78
      %p129 = scmp.lt.s32.totalorder %s13, 1
      %s130 = scalar_select %p129, %s13, 1
      %s131 = smul.addr %s130, 8
      %s132 = smul.addr %s131, 8
      %s133 = scalar_lea.vmem %s2, %s132
      %p134 = scmp.lt.s32.totalorder %s13, 1
      %s135 = scalar_select %p134, %s13, 1
      %s136 = smul.addr %s135, 20
      %s137 = smul.addr %s136, 4
      %s138 = scalar_lea.vmem %s0, %s137
      %p139 = scmp.lt.s32.totalorder %s13, 1
      %s140 = scalar_select %p139, %s13, 1
      %s141 = smul.addr %s140, 8
      %s142 = smul.addr %s141, 8
      %s143 = scalar_lea.vmem %s2, %s142
      %v145 = vld [vmem:[%s138] sm:$0xf]
      %v146 = vld [vmem:[%s138 + $0x8] sm:$0xf]
      %v147 = vld [vmem:[%s138 + $0x10] sm:$0xf]
      %v148 = vld [vmem:[%s138 + $0x18] sm:$0xf]
      %v149 = vld [vmem:[%s138 + $0x20] sm:$0xf]
      %v150 = vld [vmem:[%s138 + $0x28] sm:$0xf]
      %v151 = vld [vmem:[%s138 + $0x30] sm:$0xf]
      %v152 = vld [vmem:[%s138 + $0x38] sm:$0xf]
      %v153 = vld [vmem:[%s1] sm:$0x1]
      %v154 = vld [vmem:[%s138 + $0x4] sm:$0x1]
      %v155 = vld [vmem:[%s138 + $0xc] sm:$0x1]
      %v156 = vld [vmem:[%s138 + $0x14] sm:$0x1]
      %v157 = vld [vmem:[%s138 + $0x1c] sm:$0x1]
      %v158 = vld [vmem:[%s138 + $0x24] sm:$0x1]
      %v159 = vld [vmem:[%s138 + $0x2c] sm:$0x1]
      %v160 = vld [vmem:[%s138 + $0x34] sm:$0x1]
      %v161 = vld [vmem:[%s138 + $0x3c] sm:$0x1]
      %vm162 = vsmask.f32 3328
      %vm163 = vsmask.f32 7440
      %vm164 = vmor %vm162, %vm163
      %v166 = vshrl.u32 %v145, 16
      %v168 = vrot.slane %v166, 4
      %v169 = vshll.u32 %v145, 16
      %v171 = vrot.slane %v169, 5
      %v172 = vor.u32 %v168, %v171
      %v173 = vrot.slane %v172, 4
      %v175 = vshll.u32 %v154, 16
      %v177 = vrot.slane %v175, 5
      %v178 = vsel %vm164, %v173, %v177
      %v180 = vshrl.u32 %v146, 16
      %v182 = vrot.slane %v180, 4
      %v183 = vshll.u32 %v146, 16
      %v185 = vrot.slane %v183, 5
      %v186 = vor.u32 %v182, %v185
      %v187 = vrot.slane %v186, 4
      %v189 = vshll.u32 %v155, 16
      %v191 = vrot.slane %v189, 5
      %v192 = vsel %vm164, %v187, %v191
      %v194 = vshrl.u32 %v147, 16
      %v196 = vrot.slane %v194, 4
      %v197 = vshll.u32 %v147, 16
      %v199 = vrot.slane %v197, 5
      %v200 = vor.u32 %v196, %v199
      %v201 = vrot.slane %v200, 4
      %v203 = vshll.u32 %v156, 16
      %v205 = vrot.slane %v203, 5
      %v206 = vsel %vm164, %v201, %v205
      %v208 = vshrl.u32 %v148, 16
      %v210 = vrot.slane %v208, 4
      %v211 = vshll.u32 %v148, 16
      %v213 = vrot.slane %v211, 5
      %v214 = vor.u32 %v210, %v213
      %v215 = vrot.slane %v214, 4
      %v217 = vshll.u32 %v157, 16
      %v219 = vrot.slane %v217, 5
      %v220 = vsel %vm164, %v215, %v219
      %v222 = vshrl.u32 %v149, 16
      %v224 = vrot.slane %v222, 4
      %v225 = vshll.u32 %v149, 16
      %v227 = vrot.slane %v225, 5
      %v228 = vor.u32 %v224, %v227
      %v229 = vrot.slane %v228, 4
      %v231 = vshll.u32 %v158, 16
      %v233 = vrot.slane %v231, 5
      %v234 = vsel %vm164, %v229, %v233
      %v236 = vshrl.u32 %v150, 16
      %v238 = vrot.slane %v236, 4
      %v239 = vshll.u32 %v150, 16
      %v241 = vrot.slane %v239, 5
      %v242 = vor.u32 %v238, %v241
      %v243 = vrot.slane %v242, 4
      %v245 = vshll.u32 %v159, 16
      %v247 = vrot.slane %v245, 5
      %v248 = vsel %vm164, %v243, %v247
      %v250 = vshrl.u32 %v151, 16
      %v252 = vrot.slane %v250, 4
      %v253 = vshll.u32 %v151, 16
      %v255 = vrot.slane %v253, 5
      %v256 = vor.u32 %v252, %v255
      %v257 = vrot.slane %v256, 4
      %v259 = vshll.u32 %v160, 16
      %v261 = vrot.slane %v259, 5
      %v262 = vsel %vm164, %v257, %v261
      %v264 = vshrl.u32 %v152, 16
      %v266 = vrot.slane %v264, 4
      %v267 = vshll.u32 %v152, 16
      %v269 = vrot.slane %v267, 5
      %v270 = vor.u32 %v266, %v269
      %v271 = vrot.slane %v270, 4
      %v273 = vshll.u32 %v161, 16
      %v275 = vrot.slane %v273, 5
      %v276 = vsel %vm164, %v271, %v275
      %s277 = scalar_lea.vmem %s1, 1
      %v278 = vld [vmem:[%s277] sm:$0x1]
      %v279 = vunpack.c.l.b16 %v178
      %v280 = vunpack.c.l.b16 %v192
      %v281 = vunpack.c.l.b16 %v206
      %v282 = vunpack.c.l.b16 %v220
      %v283 = vunpack.c.l.b16 %v234
      %v284 = vunpack.c.l.b16 %v248
      %v285 = vunpack.c.l.b16 %v262
      %v286 = vunpack.c.l.b16 %v276
      %v287 = vpack.c.b16 %v280, %v279
      %v288 = vpack.c.b16 %v282, %v281
      %v289 = vpack.c.b16 %v284, %v283
      %v290 = vpack.c.b16 %v286, %v285
      %vm291 = vcmask 15360
      %v293 = vsel %vm291, %v287, 0
      %v296 = vsel %vm291, %v288, 0
      %v299 = vsel %vm291, %v289, 0
      %v302 = vsel %vm291, %v290, 0
      %vm304 = vcmask 1040384
      %v306 = vsel %vm304, %v278, 0
      %308 = vmatpush.bf16.msra.mxu0 0
      %309 = vmatpush.bf16.msra.mxu0 0
      %310 = vmatpush.bf16.msra.mxu0 0
      %311 = vmatpush.bf16.msra.mxu0 0
      %312 = vmatpush.bf16.msra.mxu0 0
      %313 = vmatpush.bf16.msra.mxu0 0
      %314 = vmatpush.bf16.msra.mxu0 0
      %315 = vmatpush.bf16.msra.mxu0 %v306
      %316 = vmatmul.bf16.gmra.mxu0 %v293
      %v317 = vpop.f32.mrf.mxu0
      %v318 = vadd.f32 0.0, %v317
      %v319 = vpop.f32.mrf.mxu0
      %v320 = vadd.f32 0.0, %v319
      %321 = vmatmul.bf16.gmra.mxu0 %v296
      %v322 = vpop.f32.mrf.mxu0
      %v323 = vadd.f32 0.0, %v322
      %v324 = vpop.f32.mrf.mxu0
      %v325 = vadd.f32 0.0, %v324
      %326 = vmatmul.bf16.gmra.mxu0 %v299
      %v327 = vpop.f32.mrf.mxu0
      %v328 = vadd.f32 0.0, %v327
      %v329 = vpop.f32.mrf.mxu0
      %v330 = vadd.f32 0.0, %v329
      %331 = vmatmul.bf16.gmra.mxu0 %v302
      %v332 = vpop.f32.mrf.mxu0
      %v333 = vadd.f32 0.0, %v332
      %v334 = vpop.f32.mrf.mxu0
      %v335 = vadd.f32 0.0, %v334
      %336 = vdwg.mxu0
      %v345 = vunpack.c.l.b16 %v145
      %v346 = vunpack.c.l.b16 %v146
      %v347 = vunpack.c.l.b16 %v147
      %v348 = vunpack.c.l.b16 %v148
      %v349 = vunpack.c.l.b16 %v149
      %v350 = vunpack.c.l.b16 %v150
      %v351 = vunpack.c.l.b16 %v151
      %v352 = vunpack.c.l.b16 %v152
      %v353 = vpack.c.b16 %v346, %v345
      %v354 = vpack.c.b16 %v348, %v347
      %v355 = vpack.c.b16 %v350, %v349
      %v356 = vpack.c.b16 %v352, %v351
      %v358 = vsel %vm291, %v353, 0
      %v361 = vsel %vm291, %v354, 0
      %v364 = vsel %vm291, %v355, 0
      %v367 = vsel %vm291, %v356, 0
      %v370 = vsel %vm304, %v153, 0
      %372 = vmatpush.bf16.msra.mxu0 0
      %373 = vmatpush.bf16.msra.mxu0 0
      %374 = vmatpush.bf16.msra.mxu0 0
      %375 = vmatpush.bf16.msra.mxu0 0
      %376 = vmatpush.bf16.msra.mxu0 0
      %377 = vmatpush.bf16.msra.mxu0 0
      %378 = vmatpush.bf16.msra.mxu0 0
      %379 = vmatpush.bf16.msra.mxu0 %v370
      %380 = vmatmul.bf16.gmra.mxu0 %v358
      %v381 = vpop.f32.mrf.mxu0
      %v382 = vadd.f32 %v318, %v381
      %v383 = vpop.f32.mrf.mxu0
      %v384 = vadd.f32 %v320, %v383
      %385 = vmatmul.bf16.gmra.mxu0 %v361
      %v386 = vpop.f32.mrf.mxu0
      %v387 = vadd.f32 %v323, %v386
      %v388 = vpop.f32.mrf.mxu0
      %v389 = vadd.f32 %v325, %v388
      %390 = vmatmul.bf16.gmra.mxu0 %v364
      %v391 = vpop.f32.mrf.mxu0
      %v392 = vadd.f32 %v328, %v391
      %v393 = vpop.f32.mrf.mxu0
      %v394 = vadd.f32 %v330, %v393
      %395 = vmatmul.bf16.gmra.mxu0 %v367
      %v396 = vpop.f32.mrf.mxu0
      %v397 = vadd.f32 %v333, %v396
      %v398 = vpop.f32.mrf.mxu0
      %v399 = vadd.f32 %v335, %v398
      %400 = vdwg.mxu0
      %v401 = vld [vmem:[%s138] sm:$0xe]
      %v402 = vld [vmem:[%s138 + $0x8] sm:$0xe]
      %v403 = vld [vmem:[%s138 + $0x10] sm:$0xe]
      %v404 = vld [vmem:[%s138 + $0x18] sm:$0xe]
      %v405 = vld [vmem:[%s138 + $0x20] sm:$0xe]
      %v406 = vld [vmem:[%s138 + $0x28] sm:$0xe]
      %v407 = vld [vmem:[%s138 + $0x30] sm:$0xe]
      %v408 = vld [vmem:[%s138 + $0x38] sm:$0xe]
      %vm425 = vcmask 1042432
      %vm426 = vcmask 1046532
      %vm427 = vmor %vm425, %vm426
      %v428 = vrot.slane %v401, 5
      %v429 = vrot.slane %v428, 4
      %v430 = vrot.slane %v154, 5
      %v431 = vsel %vm427, %v429, %v430
      %v432 = vrot.slane %v402, 5
      %v433 = vrot.slane %v432, 4
      %v434 = vrot.slane %v155, 5
      %v435 = vsel %vm427, %v433, %v434
      %v436 = vrot.slane %v403, 5
      %v437 = vrot.slane %v436, 4
      %v438 = vrot.slane %v156, 5
      %v439 = vsel %vm427, %v437, %v438
      %v440 = vrot.slane %v404, 5
      %v441 = vrot.slane %v440, 4
      %v442 = vrot.slane %v157, 5
      %v443 = vsel %vm427, %v441, %v442
      %v444 = vrot.slane %v405, 5
      %v445 = vrot.slane %v444, 4
      %v446 = vrot.slane %v158, 5
      %v447 = vsel %vm427, %v445, %v446
      %v448 = vrot.slane %v406, 5
      %v449 = vrot.slane %v448, 4
      %v450 = vrot.slane %v159, 5
      %v451 = vsel %vm427, %v449, %v450
      %v452 = vrot.slane %v407, 5
      %v453 = vrot.slane %v452, 4
      %v454 = vrot.slane %v160, 5
      %v455 = vsel %vm427, %v453, %v454
      %v456 = vrot.slane %v408, 5
      %v457 = vrot.slane %v456, 4
      %v458 = vrot.slane %v161, 5
      %v459 = vsel %vm427, %v457, %v458
      %s460 = scalar_lea.vmem %s1, 2
      %v461 = vld [vmem:[%s460] sm:$0x1]
      %v462 = vunpack.c.l.b16 %v431
      %v463 = vunpack.c.l.b16 %v435
      %v464 = vunpack.c.l.b16 %v439
      %v465 = vunpack.c.l.b16 %v443
      %v466 = vunpack.c.l.b16 %v447
      %v467 = vunpack.c.l.b16 %v451
      %v468 = vunpack.c.l.b16 %v455
      %v469 = vunpack.c.l.b16 %v459
      %v470 = vpack.c.b16 %v463, %v462
      %v471 = vpack.c.b16 %v465, %v464
      %v472 = vpack.c.b16 %v467, %v466
      %v473 = vpack.c.b16 %v469, %v468
      %v475 = vsel %vm291, %v470, 0
      %v478 = vsel %vm291, %v471, 0
      %v481 = vsel %vm291, %v472, 0
      %v484 = vsel %vm291, %v473, 0
      %v487 = vsel %vm304, %v461, 0
      %489 = vmatpush.bf16.msra.mxu0 0
      %490 = vmatpush.bf16.msra.mxu0 0
      %491 = vmatpush.bf16.msra.mxu0 0
      %492 = vmatpush.bf16.msra.mxu0 0
      %493 = vmatpush.bf16.msra.mxu0 0
      %494 = vmatpush.bf16.msra.mxu0 0
      %495 = vmatpush.bf16.msra.mxu0 0
      %496 = vmatpush.bf16.msra.mxu0 %v487
      %497 = vmatmul.bf16.gmra.mxu0 %v475
      %v498 = vpop.f32.mrf.mxu0
      %v499 = vadd.f32 0.0, %v498
      %v500 = vpop.f32.mrf.mxu0
      %v501 = vadd.f32 0.0, %v500
      %502 = vmatmul.bf16.gmra.mxu0 %v478
      %v503 = vpop.f32.mrf.mxu0
      %v504 = vadd.f32 0.0, %v503
      %v505 = vpop.f32.mrf.mxu0
      %v506 = vadd.f32 0.0, %v505
      %507 = vmatmul.bf16.gmra.mxu0 %v481
      %v508 = vpop.f32.mrf.mxu0
      %v509 = vadd.f32 0.0, %v508
      %v510 = vpop.f32.mrf.mxu0
      %v511 = vadd.f32 0.0, %v510
      %512 = vmatmul.bf16.gmra.mxu0 %v484
      %v513 = vpop.f32.mrf.mxu0
      %v514 = vadd.f32 0.0, %v513
      %v515 = vpop.f32.mrf.mxu0
      %v516 = vadd.f32 0.0, %v515
      %517 = vdwg.mxu0
      %v518 = vadd.f32 %v382, %v499
      %v519 = vadd.f32 %v384, %v501
      %v520 = vadd.f32 %v387, %v504
      %v521 = vadd.f32 %v389, %v506
      %v522 = vadd.f32 %v392, %v509
      %v523 = vadd.f32 %v394, %v511
      %v524 = vadd.f32 %v397, %v514
      %v525 = vadd.f32 %v399, %v516
      %s526 = scalar_lea.vmem %s138, 8
      %v527 = vld [vmem:[%s526] sm:$0xf]
      %v528 = vld [vmem:[%s526 + $0x8] sm:$0xf]
      %v529 = vld [vmem:[%s526 + $0x10] sm:$0xf]
      %v530 = vld [vmem:[%s526 + $0x18] sm:$0xf]
      %v531 = vld [vmem:[%s526 + $0x20] sm:$0xf]
      %v532 = vld [vmem:[%s526 + $0x28] sm:$0xf]
      %v533 = vld [vmem:[%s526 + $0x30] sm:$0xf]
      %v534 = vld [vmem:[%s526 + $0x38] sm:$0xf]
      %s535 = scalar_lea.vmem %s1, 3
      %v536 = vld [vmem:[%s535] sm:$0x1]
      %v545 = vunpack.c.l.b16 %v527
      %v546 = vunpack.c.l.b16 %v528
      %v547 = vunpack.c.l.b16 %v529
      %v548 = vunpack.c.l.b16 %v530
      %v549 = vunpack.c.l.b16 %v531
      %v550 = vunpack.c.l.b16 %v532
      %v551 = vunpack.c.l.b16 %v533
      %v552 = vunpack.c.l.b16 %v534
      %v553 = vpack.c.b16 %v546, %v545
      %v554 = vpack.c.b16 %v548, %v547
      %v555 = vpack.c.b16 %v550, %v549
      %v556 = vpack.c.b16 %v552, %v551
      %v558 = vsel %vm291, %v553, 0
      %v561 = vsel %vm291, %v554, 0
      %v564 = vsel %vm291, %v555, 0
      %v567 = vsel %vm291, %v556, 0
      %v570 = vsel %vm304, %v536, 0
      %572 = vmatpush.bf16.msra.mxu0 0
      %573 = vmatpush.bf16.msra.mxu0 0
      %574 = vmatpush.bf16.msra.mxu0 0
      %575 = vmatpush.bf16.msra.mxu0 0
      %576 = vmatpush.bf16.msra.mxu0 0
      %577 = vmatpush.bf16.msra.mxu0 0
      %578 = vmatpush.bf16.msra.mxu0 0
      %579 = vmatpush.bf16.msra.mxu0 %v570
      %580 = vmatmul.bf16.gmra.mxu0 %v558
      %v581 = vpop.f32.mrf.mxu0
      %v582 = vadd.f32 0.0, %v581
      %v583 = vpop.f32.mrf.mxu0
      %v584 = vadd.f32 0.0, %v583
      %585 = vmatmul.bf16.gmra.mxu0 %v561
      %v586 = vpop.f32.mrf.mxu0
      %v587 = vadd.f32 0.0, %v586
      %v588 = vpop.f32.mrf.mxu0
      %v589 = vadd.f32 0.0, %v588
      %590 = vmatmul.bf16.gmra.mxu0 %v564
      %v591 = vpop.f32.mrf.mxu0
      %v592 = vadd.f32 0.0, %v591
      %v593 = vpop.f32.mrf.mxu0
      %v594 = vadd.f32 0.0, %v593
      %595 = vmatmul.bf16.gmra.mxu0 %v567
      %v596 = vpop.f32.mrf.mxu0
      %v597 = vadd.f32 0.0, %v596
      %v598 = vpop.f32.mrf.mxu0
      %v599 = vadd.f32 0.0, %v598
      %600 = vdwg.mxu0
      %v601 = vadd.f32 %v518, %v582
      %v602 = vadd.f32 %v519, %v584
      %v603 = vadd.f32 %v520, %v587
      %v604 = vadd.f32 %v521, %v589
      %v605 = vadd.f32 %v522, %v592
      %v606 = vadd.f32 %v523, %v594
      %v607 = vadd.f32 %v524, %v597
      %v608 = vadd.f32 %v525, %v599
      %v609 = vld [vmem:[%s526] sm:$0xf]
      %v610 = vld [vmem:[%s526 + $0x4] sm:$0x1]
      %v611 = vld [vmem:[%s526 + $0x8] sm:$0xf]
      %v612 = vld [vmem:[%s526 + $0xc] sm:$0x1]
      %v613 = vld [vmem:[%s526 + $0x10] sm:$0xf]
      %v614 = vld [vmem:[%s526 + $0x14] sm:$0x1]
      %v615 = vld [vmem:[%s526 + $0x18] sm:$0xf]
      %v616 = vld [vmem:[%s526 + $0x1c] sm:$0x1]
      %v617 = vld [vmem:[%s526 + $0x20] sm:$0xf]
      %v618 = vld [vmem:[%s526 + $0x24] sm:$0x1]
      %v619 = vld [vmem:[%s526 + $0x28] sm:$0xf]
      %v620 = vld [vmem:[%s526 + $0x2c] sm:$0x1]
      %v621 = vld [vmem:[%s526 + $0x30] sm:$0xf]
      %v622 = vld [vmem:[%s526 + $0x34] sm:$0x1]
      %v623 = vld [vmem:[%s526 + $0x38] sm:$0xf]
      %v624 = vld [vmem:[%s526 + $0x3c] sm:$0x1]
      %v626 = vshrl.u32 %v609, 16
      %v628 = vrot.slane %v626, 4
      %v629 = vshll.u32 %v609, 16
      %v631 = vrot.slane %v629, 5
      %v632 = vor.u32 %v628, %v631
      %v633 = vrot.slane %v632, 4
      %v635 = vshll.u32 %v610, 16
      %v637 = vrot.slane %v635, 5
      %v638 = vsel %vm164, %v633, %v637
      %v640 = vshrl.u32 %v611, 16
      %v642 = vrot.slane %v640, 4
      %v643 = vshll.u32 %v611, 16
      %v645 = vrot.slane %v643, 5
      %v646 = vor.u32 %v642, %v645
      %v647 = vrot.slane %v646, 4
      %v649 = vshll.u32 %v612, 16
      %v651 = vrot.slane %v649, 5
      %v652 = vsel %vm164, %v647, %v651
      %v654 = vshrl.u32 %v613, 16
      %v656 = vrot.slane %v654, 4
      %v657 = vshll.u32 %v613, 16
      %v659 = vrot.slane %v657, 5
      %v660 = vor.u32 %v656, %v659
      %v661 = vrot.slane %v660, 4
      %v663 = vshll.u32 %v614, 16
      %v665 = vrot.slane %v663, 5
      %v666 = vsel %vm164, %v661, %v665
      %v668 = vshrl.u32 %v615, 16
      %v670 = vrot.slane %v668, 4
      %v671 = vshll.u32 %v615, 16
      %v673 = vrot.slane %v671, 5
      %v674 = vor.u32 %v670, %v673
      %v675 = vrot.slane %v674, 4
      %v677 = vshll.u32 %v616, 16
      %v679 = vrot.slane %v677, 5
      %v680 = vsel %vm164, %v675, %v679
      %v682 = vshrl.u32 %v617, 16
      %v684 = vrot.slane %v682, 4
      %v685 = vshll.u32 %v617, 16
      %v687 = vrot.slane %v685, 5
      %v688 = vor.u32 %v684, %v687
      %v689 = vrot.slane %v688, 4
      %v691 = vshll.u32 %v618, 16
      %v693 = vrot.slane %v691, 5
      %v694 = vsel %vm164, %v689, %v693
      %v696 = vshrl.u32 %v619, 16
      %v698 = vrot.slane %v696, 4
      %v699 = vshll.u32 %v619, 16
      %v701 = vrot.slane %v699, 5
      %v702 = vor.u32 %v698, %v701
      %v703 = vrot.slane %v702, 4
      %v705 = vshll.u32 %v620, 16
      %v707 = vrot.slane %v705, 5
      %v708 = vsel %vm164, %v703, %v707
      %v710 = vshrl.u32 %v621, 16
      %v712 = vrot.slane %v710, 4
      %v713 = vshll.u32 %v621, 16
      %v715 = vrot.slane %v713, 5
      %v716 = vor.u32 %v712, %v715
      %v717 = vrot.slane %v716, 4
      %v719 = vshll.u32 %v622, 16
      %v721 = vrot.slane %v719, 5
      %v722 = vsel %vm164, %v717, %v721
      %v724 = vshrl.u32 %v623, 16
      %v726 = vrot.slane %v724, 4
      %v727 = vshll.u32 %v623, 16
      %v729 = vrot.slane %v727, 5
      %v730 = vor.u32 %v726, %v729
      %v731 = vrot.slane %v730, 4
      %v733 = vshll.u32 %v624, 16
      %v735 = vrot.slane %v733, 5
      %v736 = vsel %vm164, %v731, %v735
      %s737 = scalar_lea.vmem %s1, 4
      %v738 = vld [vmem:[%s737] sm:$0x1]
      %v739 = vunpack.c.l.b16 %v638
      %v740 = vunpack.c.l.b16 %v652
      %v741 = vunpack.c.l.b16 %v666
      %v742 = vunpack.c.l.b16 %v680
      %v743 = vunpack.c.l.b16 %v694
      %v744 = vunpack.c.l.b16 %v708
      %v745 = vunpack.c.l.b16 %v722
      %v746 = vunpack.c.l.b16 %v736
      %v747 = vpack.c.b16 %v740, %v739
      %v748 = vpack.c.b16 %v742, %v741
      %v749 = vpack.c.b16 %v744, %v743
      %v750 = vpack.c.b16 %v746, %v745
      %v752 = vsel %vm291, %v747, 0
      %v755 = vsel %vm291, %v748, 0
      %v758 = vsel %vm291, %v749, 0
      %v761 = vsel %vm291, %v750, 0
      %v764 = vsel %vm304, %v738, 0
      %766 = vmatpush.bf16.msra.mxu0 0
      %767 = vmatpush.bf16.msra.mxu0 0
      %768 = vmatpush.bf16.msra.mxu0 0
      %769 = vmatpush.bf16.msra.mxu0 0
      %770 = vmatpush.bf16.msra.mxu0 0
      %771 = vmatpush.bf16.msra.mxu0 0
      %772 = vmatpush.bf16.msra.mxu0 0
      %773 = vmatpush.bf16.msra.mxu0 %v764
      %774 = vmatmul.bf16.gmra.mxu0 %v752
      %v775 = vpop.f32.mrf.mxu0
      %v776 = vadd.f32 0.0, %v775
      %v777 = vpop.f32.mrf.mxu0
      %v778 = vadd.f32 0.0, %v777
      %779 = vmatmul.bf16.gmra.mxu0 %v755
      %v780 = vpop.f32.mrf.mxu0
      %v781 = vadd.f32 0.0, %v780
      %v782 = vpop.f32.mrf.mxu0
      %v783 = vadd.f32 0.0, %v782
      %784 = vmatmul.bf16.gmra.mxu0 %v758
      %v785 = vpop.f32.mrf.mxu0
      %v786 = vadd.f32 0.0, %v785
      %v787 = vpop.f32.mrf.mxu0
      %v788 = vadd.f32 0.0, %v787
      %789 = vmatmul.bf16.gmra.mxu0 %v761
      %v790 = vpop.f32.mrf.mxu0
      %v791 = vadd.f32 0.0, %v790
      %v792 = vpop.f32.mrf.mxu0
      %v793 = vadd.f32 0.0, %v792
      %794 = vdwg.mxu0
      %v795 = vadd.f32 %v601, %v776
      %v796 = vadd.f32 %v602, %v778
      %v797 = vadd.f32 %v603, %v781
      %v798 = vadd.f32 %v604, %v783
      %v799 = vadd.f32 %v605, %v786
      %v800 = vadd.f32 %v606, %v788
      %v801 = vadd.f32 %v607, %v791
      %v802 = vadd.f32 %v608, %v793
      %v803 = vld [vmem:[%s526] sm:$0xe]
      %v804 = vld [vmem:[%s526 + $0x8] sm:$0xe]
      %v805 = vld [vmem:[%s526 + $0x10] sm:$0xe]
      %v806 = vld [vmem:[%s526 + $0x18] sm:$0xe]
      %v807 = vld [vmem:[%s526 + $0x20] sm:$0xe]
      %v808 = vld [vmem:[%s526 + $0x28] sm:$0xe]
      %v809 = vld [vmem:[%s526 + $0x30] sm:$0xe]
      %v810 = vld [vmem:[%s526 + $0x38] sm:$0xe]
      %v827 = vrot.slane %v803, 5
      %v828 = vrot.slane %v827, 4
      %v829 = vrot.slane %v610, 5
      %v830 = vsel %vm427, %v828, %v829
      %v831 = vrot.slane %v804, 5
      %v832 = vrot.slane %v831, 4
      %v833 = vrot.slane %v612, 5
      %v834 = vsel %vm427, %v832, %v833
      %v835 = vrot.slane %v805, 5
      %v836 = vrot.slane %v835, 4
      %v837 = vrot.slane %v614, 5
      %v838 = vsel %vm427, %v836, %v837
      %v839 = vrot.slane %v806, 5
      %v840 = vrot.slane %v839, 4
      %v841 = vrot.slane %v616, 5
      %v842 = vsel %vm427, %v840, %v841
      %v843 = vrot.slane %v807, 5
      %v844 = vrot.slane %v843, 4
      %v845 = vrot.slane %v618, 5
      %v846 = vsel %vm427, %v844, %v845
      %v847 = vrot.slane %v808, 5
      %v848 = vrot.slane %v847, 4
      %v849 = vrot.slane %v620, 5
      %v850 = vsel %vm427, %v848, %v849
      %v851 = vrot.slane %v809, 5
      %v852 = vrot.slane %v851, 4
      %v853 = vrot.slane %v622, 5
      %v854 = vsel %vm427, %v852, %v853
      %v855 = vrot.slane %v810, 5
      %v856 = vrot.slane %v855, 4
      %v857 = vrot.slane %v624, 5
      %v858 = vsel %vm427, %v856, %v857
      %s859 = scalar_lea.vmem %s1, 5
      %v860 = vld [vmem:[%s859] sm:$0x1]
      %v861 = vunpack.c.l.b16 %v830
      %v862 = vunpack.c.l.b16 %v834
      %v863 = vunpack.c.l.b16 %v838
      %v864 = vunpack.c.l.b16 %v842
      %v865 = vunpack.c.l.b16 %v846
      %v866 = vunpack.c.l.b16 %v850
      %v867 = vunpack.c.l.b16 %v854
      %v868 = vunpack.c.l.b16 %v858
      %v869 = vpack.c.b16 %v862, %v861
      %v870 = vpack.c.b16 %v864, %v863
      %v871 = vpack.c.b16 %v866, %v865
      %v872 = vpack.c.b16 %v868, %v867
      %v874 = vsel %vm291, %v869, 0
      %v877 = vsel %vm291, %v870, 0
      %v880 = vsel %vm291, %v871, 0
      %v883 = vsel %vm291, %v872, 0
      %v886 = vsel %vm304, %v860, 0
      %888 = vmatpush.bf16.msra.mxu0 0
      %889 = vmatpush.bf16.msra.mxu0 0
      %890 = vmatpush.bf16.msra.mxu0 0
      %891 = vmatpush.bf16.msra.mxu0 0
      %892 = vmatpush.bf16.msra.mxu0 0
      %893 = vmatpush.bf16.msra.mxu0 0
      %894 = vmatpush.bf16.msra.mxu0 0
      %895 = vmatpush.bf16.msra.mxu0 %v886
      %896 = vmatmul.bf16.gmra.mxu0 %v874
      %v897 = vpop.f32.mrf.mxu0
      %v898 = vadd.f32 0.0, %v897
      %v899 = vpop.f32.mrf.mxu0
      %v900 = vadd.f32 0.0, %v899
      %901 = vmatmul.bf16.gmra.mxu0 %v877
      %v902 = vpop.f32.mrf.mxu0
      %v903 = vadd.f32 0.0, %v902
      %v904 = vpop.f32.mrf.mxu0
      %v905 = vadd.f32 0.0, %v904
      %906 = vmatmul.bf16.gmra.mxu0 %v880
      %v907 = vpop.f32.mrf.mxu0
      %v908 = vadd.f32 0.0, %v907
      %v909 = vpop.f32.mrf.mxu0
      %v910 = vadd.f32 0.0, %v909
      %911 = vmatmul.bf16.gmra.mxu0 %v883
      %v912 = vpop.f32.mrf.mxu0
      %v913 = vadd.f32 0.0, %v912
      %v914 = vpop.f32.mrf.mxu0
      %v915 = vadd.f32 0.0, %v914
      %916 = vdwg.mxu0
      %v917 = vadd.f32 %v795, %v898
      %v918 = vadd.f32 %v796, %v900
      %v919 = vadd.f32 %v797, %v903
      %v920 = vadd.f32 %v798, %v905
      %v921 = vadd.f32 %v799, %v908
      %v922 = vadd.f32 %v800, %v910
      %v923 = vadd.f32 %v801, %v913
      %v924 = vadd.f32 %v802, %v915
      %s925 = scalar_lea.vmem %s138, 16
      %v926 = vld [vmem:[%s925] sm:$0xf]
      %v927 = vld [vmem:[%s925 + $0x8] sm:$0xf]
      %v928 = vld [vmem:[%s925 + $0x10] sm:$0xf]
      %v929 = vld [vmem:[%s925 + $0x18] sm:$0xf]
      %v930 = vld [vmem:[%s925 + $0x20] sm:$0xf]
      %v931 = vld [vmem:[%s925 + $0x28] sm:$0xf]
      %v932 = vld [vmem:[%s925 + $0x30] sm:$0xf]
      %v933 = vld [vmem:[%s925 + $0x38] sm:$0xf]
      %s934 = scalar_lea.vmem %s1, 6
      %v935 = vld [vmem:[%s934] sm:$0x1]
      %v944 = vunpack.c.l.b16 %v926
      %v945 = vunpack.c.l.b16 %v927
      %v946 = vunpack.c.l.b16 %v928
      %v947 = vunpack.c.l.b16 %v929
      %v948 = vunpack.c.l.b16 %v930
      %v949 = vunpack.c.l.b16 %v931
      %v950 = vunpack.c.l.b16 %v932
      %v951 = vunpack.c.l.b16 %v933
      %v952 = vpack.c.b16 %v945, %v944
      %v953 = vpack.c.b16 %v947, %v946
      %v954 = vpack.c.b16 %v949, %v948
      %v955 = vpack.c.b16 %v951, %v950
      %v957 = vsel %vm291, %v952, 0
      %v960 = vsel %vm291, %v953, 0
      %v963 = vsel %vm291, %v954, 0
      %v966 = vsel %vm291, %v955, 0
      %v969 = vsel %vm304, %v935, 0
      %971 = vmatpush.bf16.msra.mxu0 0
      %972 = vmatpush.bf16.msra.mxu0 0
      %973 = vmatpush.bf16.msra.mxu0 0
      %974 = vmatpush.bf16.msra.mxu0 0
      %975 = vmatpush.bf16.msra.mxu0 0
      %976 = vmatpush.bf16.msra.mxu0 0
      %977 = vmatpush.bf16.msra.mxu0 0
      %978 = vmatpush.bf16.msra.mxu0 %v969
      %979 = vmatmul.bf16.gmra.mxu0 %v957
      %v980 = vpop.f32.mrf.mxu0
      %v981 = vadd.f32 0.0, %v980
      %v982 = vpop.f32.mrf.mxu0
      %v983 = vadd.f32 0.0, %v982
      %984 = vmatmul.bf16.gmra.mxu0 %v960
      %v985 = vpop.f32.mrf.mxu0
      %v986 = vadd.f32 0.0, %v985
      %v987 = vpop.f32.mrf.mxu0
      %v988 = vadd.f32 0.0, %v987
      %989 = vmatmul.bf16.gmra.mxu0 %v963
      %v990 = vpop.f32.mrf.mxu0
      %v991 = vadd.f32 0.0, %v990
      %v992 = vpop.f32.mrf.mxu0
      %v993 = vadd.f32 0.0, %v992
      %994 = vmatmul.bf16.gmra.mxu0 %v966
      %v995 = vpop.f32.mrf.mxu0
      %v996 = vadd.f32 0.0, %v995
      %v997 = vpop.f32.mrf.mxu0
      %v998 = vadd.f32 0.0, %v997
      %999 = vdwg.mxu0
      %v1000 = vadd.f32 %v917, %v981
      %v1001 = vadd.f32 %v918, %v983
      %v1002 = vadd.f32 %v919, %v986
      %v1003 = vadd.f32 %v920, %v988
      %v1004 = vadd.f32 %v921, %v991
      %v1005 = vadd.f32 %v922, %v993
      %v1006 = vadd.f32 %v923, %v996
      %v1007 = vadd.f32 %v924, %v998
      %v1008 = vld [vmem:[%s925] sm:$0xf]
      %v1009 = vld [vmem:[%s925 + $0x4] sm:$0x1]
      %v1010 = vld [vmem:[%s925 + $0x8] sm:$0xf]
      %v1011 = vld [vmem:[%s925 + $0xc] sm:$0x1]
      %v1012 = vld [vmem:[%s925 + $0x10] sm:$0xf]
      %v1013 = vld [vmem:[%s925 + $0x14] sm:$0x1]
      %v1014 = vld [vmem:[%s925 + $0x18] sm:$0xf]
      %v1015 = vld [vmem:[%s925 + $0x1c] sm:$0x1]
      %v1016 = vld [vmem:[%s925 + $0x20] sm:$0xf]
      %v1017 = vld [vmem:[%s925 + $0x24] sm:$0x1]
      %v1018 = vld [vmem:[%s925 + $0x28] sm:$0xf]
      %v1019 = vld [vmem:[%s925 + $0x2c] sm:$0x1]
      %v1020 = vld [vmem:[%s925 + $0x30] sm:$0xf]
      %v1021 = vld [vmem:[%s925 + $0x34] sm:$0x1]
      %v1022 = vld [vmem:[%s925 + $0x38] sm:$0xf]
      %v1023 = vld [vmem:[%s925 + $0x3c] sm:$0x1]
      %v1025 = vshrl.u32 %v1008, 16
      %v1027 = vrot.slane %v1025, 4
      %v1028 = vshll.u32 %v1008, 16
      %v1030 = vrot.slane %v1028, 5
      %v1031 = vor.u32 %v1027, %v1030
      %v1032 = vrot.slane %v1031, 4
      %v1034 = vshll.u32 %v1009, 16
      %v1036 = vrot.slane %v1034, 5
      %v1037 = vsel %vm164, %v1032, %v1036
      %v1039 = vshrl.u32 %v1010, 16
      %v1041 = vrot.slane %v1039, 4
      %v1042 = vshll.u32 %v1010, 16
      %v1044 = vrot.slane %v1042, 5
      %v1045 = vor.u32 %v1041, %v1044
      %v1046 = vrot.slane %v1045, 4
      %v1048 = vshll.u32 %v1011, 16
      %v1050 = vrot.slane %v1048, 5
      %v1051 = vsel %vm164, %v1046, %v1050
      %v1053 = vshrl.u32 %v1012, 16
      %v1055 = vrot.slane %v1053, 4
      %v1056 = vshll.u32 %v1012, 16
      %v1058 = vrot.slane %v1056, 5
      %v1059 = vor.u32 %v1055, %v1058
      %v1060 = vrot.slane %v1059, 4
      %v1062 = vshll.u32 %v1013, 16
      %v1064 = vrot.slane %v1062, 5
      %v1065 = vsel %vm164, %v1060, %v1064
      %v1067 = vshrl.u32 %v1014, 16
      %v1069 = vrot.slane %v1067, 4
      %v1070 = vshll.u32 %v1014, 16
      %v1072 = vrot.slane %v1070, 5
      %v1073 = vor.u32 %v1069, %v1072
      %v1074 = vrot.slane %v1073, 4
      %v1076 = vshll.u32 %v1015, 16
      %v1078 = vrot.slane %v1076, 5
      %v1079 = vsel %vm164, %v1074, %v1078
      %v1081 = vshrl.u32 %v1016, 16
      %v1083 = vrot.slane %v1081, 4
      %v1084 = vshll.u32 %v1016, 16
      %v1086 = vrot.slane %v1084, 5
      %v1087 = vor.u32 %v1083, %v1086
      %v1088 = vrot.slane %v1087, 4
      %v1090 = vshll.u32 %v1017, 16
      %v1092 = vrot.slane %v1090, 5
      %v1093 = vsel %vm164, %v1088, %v1092
      %v1095 = vshrl.u32 %v1018, 16
      %v1097 = vrot.slane %v1095, 4
      %v1098 = vshll.u32 %v1018, 16
      %v1100 = vrot.slane %v1098, 5
      %v1101 = vor.u32 %v1097, %v1100
      %v1102 = vrot.slane %v1101, 4
      %v1104 = vshll.u32 %v1019, 16
      %v1106 = vrot.slane %v1104, 5
      %v1107 = vsel %vm164, %v1102, %v1106
      %v1109 = vshrl.u32 %v1020, 16
      %v1111 = vrot.slane %v1109, 4
      %v1112 = vshll.u32 %v1020, 16
      %v1114 = vrot.slane %v1112, 5
      %v1115 = vor.u32 %v1111, %v1114
      %v1116 = vrot.slane %v1115, 4
      %v1118 = vshll.u32 %v1021, 16
      %v1120 = vrot.slane %v1118, 5
      %v1121 = vsel %vm164, %v1116, %v1120
      %v1123 = vshrl.u32 %v1022, 16
      %v1125 = vrot.slane %v1123, 4
      %v1126 = vshll.u32 %v1022, 16
      %v1128 = vrot.slane %v1126, 5
      %v1129 = vor.u32 %v1125, %v1128
      %v1130 = vrot.slane %v1129, 4
      %v1132 = vshll.u32 %v1023, 16
      %v1134 = vrot.slane %v1132, 5
      %v1135 = vsel %vm164, %v1130, %v1134
      %s1136 = scalar_lea.vmem %s1, 7
      %v1137 = vld [vmem:[%s1136] sm:$0x1]
      %v1138 = vunpack.c.l.b16 %v1037
      %v1139 = vunpack.c.l.b16 %v1051
      %v1140 = vunpack.c.l.b16 %v1065
      %v1141 = vunpack.c.l.b16 %v1079
      %v1142 = vunpack.c.l.b16 %v1093
      %v1143 = vunpack.c.l.b16 %v1107
      %v1144 = vunpack.c.l.b16 %v1121
      %v1145 = vunpack.c.l.b16 %v1135
      %v1146 = vpack.c.b16 %v1139, %v1138
      %v1147 = vpack.c.b16 %v1141, %v1140
      %v1148 = vpack.c.b16 %v1143, %v1142
      %v1149 = vpack.c.b16 %v1145, %v1144
      %v1151 = vsel %vm291, %v1146, 0
      %v1154 = vsel %vm291, %v1147, 0
      %v1157 = vsel %vm291, %v1148, 0
      %v1160 = vsel %vm291, %v1149, 0
      %v1163 = vsel %vm304, %v1137, 0
      %1165 = vmatpush.bf16.msra.mxu0 0
      %1166 = vmatpush.bf16.msra.mxu0 0
      %1167 = vmatpush.bf16.msra.mxu0 0
      %1168 = vmatpush.bf16.msra.mxu0 0
      %1169 = vmatpush.bf16.msra.mxu0 0
      %1170 = vmatpush.bf16.msra.mxu0 0
      %1171 = vmatpush.bf16.msra.mxu0 0
      %1172 = vmatpush.bf16.msra.mxu0 %v1163
      %1173 = vmatmul.bf16.gmra.mxu0 %v1151
      %v1174 = vpop.f32.mrf.mxu0
      %v1175 = vadd.f32 0.0, %v1174
      %v1176 = vpop.f32.mrf.mxu0
      %v1177 = vadd.f32 0.0, %v1176
      %1178 = vmatmul.bf16.gmra.mxu0 %v1154
      %v1179 = vpop.f32.mrf.mxu0
      %v1180 = vadd.f32 0.0, %v1179
      %v1181 = vpop.f32.mrf.mxu0
      %v1182 = vadd.f32 0.0, %v1181
      %1183 = vmatmul.bf16.gmra.mxu0 %v1157
      %v1184 = vpop.f32.mrf.mxu0
      %v1185 = vadd.f32 0.0, %v1184
      %v1186 = vpop.f32.mrf.mxu0
      %v1187 = vadd.f32 0.0, %v1186
      %1188 = vmatmul.bf16.gmra.mxu0 %v1160
      %v1189 = vpop.f32.mrf.mxu0
      %v1190 = vadd.f32 0.0, %v1189
      %v1191 = vpop.f32.mrf.mxu0
      %v1192 = vadd.f32 0.0, %v1191
      %1193 = vdwg.mxu0
      %v1194 = vadd.f32 %v1000, %v1175
      %v1195 = vadd.f32 %v1001, %v1177
      %v1196 = vadd.f32 %v1002, %v1180
      %v1197 = vadd.f32 %v1003, %v1182
      %v1198 = vadd.f32 %v1004, %v1185
      %v1199 = vadd.f32 %v1005, %v1187
      %v1200 = vadd.f32 %v1006, %v1190
      %v1201 = vadd.f32 %v1007, %v1192
      %v1202 = vld [vmem:[%s925] sm:$0xe]
      %v1203 = vld [vmem:[%s925 + $0x8] sm:$0xe]
      %v1204 = vld [vmem:[%s925 + $0x10] sm:$0xe]
      %v1205 = vld [vmem:[%s925 + $0x18] sm:$0xe]
      %v1206 = vld [vmem:[%s925 + $0x20] sm:$0xe]
      %v1207 = vld [vmem:[%s925 + $0x28] sm:$0xe]
      %v1208 = vld [vmem:[%s925 + $0x30] sm:$0xe]
      %v1209 = vld [vmem:[%s925 + $0x38] sm:$0xe]
      %v1226 = vrot.slane %v1202, 5
      %v1227 = vrot.slane %v1226, 4
      %v1228 = vrot.slane %v1009, 5
      %v1229 = vsel %vm427, %v1227, %v1228
      %v1230 = vrot.slane %v1203, 5
      %v1231 = vrot.slane %v1230, 4
      %v1232 = vrot.slane %v1011, 5
      %v1233 = vsel %vm427, %v1231, %v1232
      %v1234 = vrot.slane %v1204, 5
      %v1235 = vrot.slane %v1234, 4
      %v1236 = vrot.slane %v1013, 5
      %v1237 = vsel %vm427, %v1235, %v1236
      %v1238 = vrot.slane %v1205, 5
      %v1239 = vrot.slane %v1238, 4
      %v1240 = vrot.slane %v1015, 5
      %v1241 = vsel %vm427, %v1239, %v1240
      %v1242 = vrot.slane %v1206, 5
      %v1243 = vrot.slane %v1242, 4
      %v1244 = vrot.slane %v1017, 5
      %v1245 = vsel %vm427, %v1243, %v1244
      %v1246 = vrot.slane %v1207, 5
      %v1247 = vrot.slane %v1246, 4
      %v1248 = vrot.slane %v1019, 5
      %v1249 = vsel %vm427, %v1247, %v1248
      %v1250 = vrot.slane %v1208, 5
      %v1251 = vrot.slane %v1250, 4
      %v1252 = vrot.slane %v1021, 5
      %v1253 = vsel %vm427, %v1251, %v1252
      %v1254 = vrot.slane %v1209, 5
      %v1255 = vrot.slane %v1254, 4
      %v1256 = vrot.slane %v1023, 5
      %v1257 = vsel %vm427, %v1255, %v1256
      %s1258 = scalar_lea.vmem %s1, 8
      %v1259 = vld [vmem:[%s1258] sm:$0x1]
      %v1260 = vunpack.c.l.b16 %v1229
      %v1261 = vunpack.c.l.b16 %v1233
      %v1262 = vunpack.c.l.b16 %v1237
      %v1263 = vunpack.c.l.b16 %v1241
      %v1264 = vunpack.c.l.b16 %v1245
      %v1265 = vunpack.c.l.b16 %v1249
      %v1266 = vunpack.c.l.b16 %v1253
      %v1267 = vunpack.c.l.b16 %v1257
      %v1268 = vpack.c.b16 %v1261, %v1260
      %v1269 = vpack.c.b16 %v1263, %v1262
      %v1270 = vpack.c.b16 %v1265, %v1264
      %v1271 = vpack.c.b16 %v1267, %v1266
      %v1273 = vsel %vm291, %v1268, 0
      %v1276 = vsel %vm291, %v1269, 0
      %v1279 = vsel %vm291, %v1270, 0
      %v1282 = vsel %vm291, %v1271, 0
      %v1285 = vsel %vm304, %v1259, 0
      %1287 = vmatpush.bf16.msra.mxu0 0
      %1288 = vmatpush.bf16.msra.mxu0 0
      %1289 = vmatpush.bf16.msra.mxu0 0
      %1290 = vmatpush.bf16.msra.mxu0 0
      %1291 = vmatpush.bf16.msra.mxu0 0
      %1292 = vmatpush.bf16.msra.mxu0 0
      %1293 = vmatpush.bf16.msra.mxu0 0
      %1294 = vmatpush.bf16.msra.mxu0 %v1285
      %1295 = vmatmul.bf16.gmra.mxu0 %v1273
      %v1296 = vpop.f32.mrf.mxu0
      %v1297 = vadd.f32 0.0, %v1296
      %v1298 = vpop.f32.mrf.mxu0
      %v1299 = vadd.f32 0.0, %v1298
      %1300 = vmatmul.bf16.gmra.mxu0 %v1276
      %v1301 = vpop.f32.mrf.mxu0
      %v1302 = vadd.f32 0.0, %v1301
      %v1303 = vpop.f32.mrf.mxu0
      %v1304 = vadd.f32 0.0, %v1303
      %1305 = vmatmul.bf16.gmra.mxu0 %v1279
      %v1306 = vpop.f32.mrf.mxu0
      %v1307 = vadd.f32 0.0, %v1306
      %v1308 = vpop.f32.mrf.mxu0
      %v1309 = vadd.f32 0.0, %v1308
      %1310 = vmatmul.bf16.gmra.mxu0 %v1282
      %v1311 = vpop.f32.mrf.mxu0
      %v1312 = vadd.f32 0.0, %v1311
      %v1313 = vpop.f32.mrf.mxu0
      %v1314 = vadd.f32 0.0, %v1313
      %1315 = vdwg.mxu0
      %v1316 = vadd.f32 %v1194, %v1297
      %v1317 = vadd.f32 %v1195, %v1299
      %v1318 = vadd.f32 %v1196, %v1302
      %v1319 = vadd.f32 %v1197, %v1304
      %v1320 = vadd.f32 %v1198, %v1307
      %v1321 = vadd.f32 %v1199, %v1309
      %v1322 = vadd.f32 %v1200, %v1312
      %v1323 = vadd.f32 %v1201, %v1314
      %1324 = vst.msk [vmem:[%s143] sm:$0xff] %vm291, %v1316
      %1325 = vst.msk [vmem:[%s143 + $0x8] sm:$0xff] %vm291, %v1317
      %1326 = vst.msk [vmem:[%s143 + $0x10] sm:$0xff] %vm291, %v1318
      %1327 = vst.msk [vmem:[%s143 + $0x18] sm:$0xff] %vm291, %v1319
      %1328 = vst.msk [vmem:[%s143 + $0x20] sm:$0xff] %vm291, %v1320
      %1329 = vst.msk [vmem:[%s143 + $0x28] sm:$0xff] %vm291, %v1321
      %1330 = vst.msk [vmem:[%s143 + $0x30] sm:$0xff] %vm291, %v1322
      %1331 = vst.msk [vmem:[%s143 + $0x38] sm:$0xff] %vm291, %v1323
      %p1332 = scmp.lt.s32.totalorder %s13, 1
      %s1333 = scalar_select %p1332, %s13, 1
      %s1334 = smul.addr %s1333, 8
      %s1335 = smul.addr %s1334, 8
      %s1336 = scalar_lea.vmem %s2, %s1335
      // Predicated region
      $region29: #{tpu_custom_call.1} parent=27 // pred_check
        %p1337 = pneg %p78
      $region30: #{tpu_custom_call.1} parent=27 // pred_check_branch
        %1339 = sbr.rel (%p1337) target = $region32
      $region31: #{tpu_custom_call.1} parent=27 // pred_region
        _
      $region32: #{tpu_custom_call.1} parent=27 // pred_fallthru
        _
    $region28: #{tpu_custom_call.1} parent=5 // pred_fallthru
      _
    %p1340 = scmp.le.s32.totalorder 2, %s8
    // Predicated region
    $region33: #{tpu_custom_call.1} parent=5 // pred_check
      %p1341 = pneg %p1340
    $region34: #{tpu_custom_call.1} parent=5 // pred_check_branch
      %1343 = sbr.rel (%p1341) target = $region36
    $region35: #{tpu_custom_call.1} parent=5 // pred_region
      %s1344 = ssub.s32 %s8, 2
      // Predicated region
      $region37: #{tpu_custom_call.1} parent=35 // pred_check
        %p1345 = pneg %p84
      $region38: #{tpu_custom_call.1} parent=35 // pred_check_branch
        %1347 = sbr.rel (%p1345) target = $region40
      $region39: #{tpu_custom_call.1} parent=35 // pred_region
        %p1348 = scmp.lt.s32.totalorder %s14, 1
        %s1349 = scalar_select %p1348, %s14, 1
        %s1350 = smul.addr %s1349, 8
        %s1351 = smul.addr %s1350, 8
        %s1352 = scalar_lea.vmem %s2, %s1351
      $region40: #{tpu_custom_call.1} parent=35 // pred_fallthru
        _
    $region36: #{tpu_custom_call.1} parent=5 // pred_fallthru
      _
  $region6: #{tpu_custom_call.1} parent=0 // loop_footer
    %s12 = sadd.s32 1, %s8
  $region7: #{tpu_custom_call.1} parent=0 // loop_footer_branch
    %7 = sbr.rel target = $region3
  $region8: #{tpu_custom_call.1} parent=0 // loop_exit
    _

</llo_original>
